<compile_context>
chip_gen: v6e
topology: v6e:2x2x1
jax: 0.10.0
libtpu: 0.0.40
codegen_flags: <defaults>
</compile_context>

<pallas_src>
import jax
import jax.numpy as jnp
from jax.experimental import pallas as pl
from jax.experimental.pallas import tpu as pltpu

NUM_GROUPS = 32          # fixed by gn() in the reference module
F32 = jnp.float32
BF16 = jnp.bfloat16


# --------------------------------------------------------------------------- small helpers

def _interp_matrix(out_size, in_size, dtype=jnp.float32):
    """Row-stochastic 1-D bilinear interpolation matrix, align_corners=True."""
    if out_size == 1:
        return jnp.zeros((1, in_size), dtype).at[0, 0].set(1.0)
    i = jnp.arange(out_size, dtype=jnp.float32)
    s = i * (in_size - 1) / (out_size - 1)
    i0 = jnp.clip(jnp.floor(s).astype(jnp.int32), 0, in_size - 1)
    i1 = jnp.minimum(i0 + 1, in_size - 1)
    w1 = s - i0.astype(jnp.float32)
    w0 = 1.0 - w1
    rows = jnp.arange(out_size)
    m = jnp.zeros((out_size, in_size), dtype)
    return m.at[rows, i0].add(w0).at[rows, i1].add(w1)


def _gn_scale_offset(x, gamma, beta, num_groups, eps=1e-5):
    """GroupNorm statistics over the full (H*W, C) extent of a (B, H*W, C) slab.

    Returns per-(batch, channel) scale / offset (B, 1, C) with the affine folded in, so the
    normalization itself is one multiply + add per element.  Sum and sum-of-squares come
    from a single traversal (XLA fuses the two reductions)."""
    b, hw, c = x.shape
    cg = c // num_groups
    xg = x.reshape(b, hw, num_groups, cg)
    s1 = jnp.sum(xg, axis=(1, 3))
    s2 = jnp.sum(xg * xg, axis=(1, 3))
    n = hw * cg
    mean = s1 / n
    var = s2 / n - mean * mean
    rstd = jax.lax.rsqrt(var + eps)                                  # (B, G)
    scale = gamma.reshape(1, c) * jnp.repeat(rstd, cg, axis=1)
    offset = beta.reshape(1, c) - jnp.repeat(mean, cg, axis=1) * scale
    return scale[:, None, :], offset[:, None, :]


def _group_norm(x, gamma, beta, num_groups, eps=1e-5):
    """Reference-only GroupNorm over an (HW, C) slab (affine folded)."""
    hw, c = x.shape
    cg = c // num_groups
    m_c = jnp.mean(x, axis=0, keepdims=True)
    m2_c = jnp.mean(x * x, axis=0, keepdims=True)
    if cg > 1:
        m_g = jnp.mean(m_c.reshape(num_groups, cg), axis=1, keepdims=True)
        m2_g = jnp.mean(m2_c.reshape(num_groups, cg), axis=1, keepdims=True)
        mean_c = jnp.broadcast_to(m_g, (num_groups, cg)).reshape(1, c)
        mean2_c = jnp.broadcast_to(m2_g, (num_groups, cg)).reshape(1, c)
    else:
        mean_c, mean2_c = m_c, m2_c
    var_c = mean2_c - mean_c * mean_c
    scale = gamma * jax.lax.rsqrt(var_c + eps)
    offset = beta - mean_c * scale
    return x * scale + offset


def _halo_windows(x, H, W, C, TR, halo):
    """(B, H*W, C) -> (B*NT, (TR + 2*halo)*W, C) overlapping row windows.

    Rows outside the image are zero -- exactly the zero padding the 3x3 convolutions need,
    so the kernels never row-mask at tile or image boundaries."""
    B = x.shape[0]
    NT = H // TR
    xi = x.reshape(B, H, W, C)
    xp = jnp.pad(xi, ((0, 0), (halo, halo), (0, 0), (0, 0)))
    win = jnp.stack([xp[:, t * TR: t * TR + TR + 2 * halo] for t in range(NT)], axis=1)
    return win.reshape(B * NT, (TR + 2 * halo) * W, C)


def _vmem_limit_bytes():
    """Generation-aware scoped-VMEM limit (v5e/v6e: 128 MiB physical, v7x: 64 MiB)."""
    cap = 64 * 1024 * 1024                         # conservative fallback (assume v7x)
    try:
        cap = int(pltpu.get_tpu_info().vmem_capacity_bytes)
    except Exception:
        pass
    return int(min(64 * 1024 * 1024, (cap * 3) // 4))


def _choose_row_tile(H):
    """Largest divisor of H in {16, 8}: keeps every Pallas block dim 8-aligned and the
    per-tile working set small enough for v7x's 64 MiB VMEM; whole image otherwise."""
    for tr in (16, 8):
        if H % tr == 0:
            return tr
    return H


# --------------------------------------------------------------------------- row shifts

_SHIFT_IMPL = None


def _row_shift_impl():
    """Return shift(x, d) with shift(x, d)[i] = x[i + d] along axis 0 of a 2-D slab.

    Rows at the extreme ends either wrap (roll) or are zero-filled (slice fallback); callers
    mask / never consume those rows.  Prefers pltpu.roll (runs in the XLU slot, no sublane
    relayout) and pins its rotation convention with a one-time micro-probe; falls back to a
    slice+concat shift if roll is unavailable."""
    global _SHIFT_IMPL
    if _SHIFT_IMPL is not None:
        return _SHIFT_IMPL

    def _slice_shift(x, d):
        if d == 0:
            return x
        n, c = x.shape
        z = jnp.zeros((abs(d), c), x.dtype)
        if d > 0:
            return jnp.concatenate([jax.lax.slice(x, (d, 0), (n, c)), z], axis=0)
        return jnp.concatenate([z, jax.lax.slice(x, (0, 0), (n + d, c))], axis=0)

    sign = None
    try:
        def probe(x_ref, o_ref):
            o_ref[...] = pltpu.roll(x_ref[...], shift=1, axis=0)

        x = jnp.arange(48, dtype=F32)[:, None] * jnp.ones((1, 32), F32)
        y = jax.block_until_ready(
            pl.pallas_call(probe, out_shape=jax.ShapeDtypeStruct((48, 32), F32))(x))
        if bool(jnp.array_equal(y, jnp.roll(x, 1, axis=0))):
            sign = -1            # pltpu.roll == jnp.roll: x[i + d] needs shift = -d
        elif bool(jnp.array_equal(y, jnp.roll(x, -1, axis=0))):
            sign = 1
    except Exception:
        sign = None

    if sign is None:
        _SHIFT_IMPL = _slice_shift
    else:
        def _roll_shift(x, d, _sign=sign):
            if d == 0:
                return x
            return pltpu.roll(x, shift=(_sign * d) % x.shape[0], axis=0)
        _SHIFT_IMPL = _roll_shift
    return _SHIFT_IMPL


# --------------------------------------------------------------------------- kernels

def _make_kernel_a(project_first):
    """1x1 conv_low [+ 1x1 conv_high] + attention 1x1 (split K=Co matmuls, no concat)."""
    if project_first:
        def kernel(low_ref, high_ref, wl_ref, bl_ref, wal_ref, wah_ref, ba_ref,
                   low_out, high_out, a_out):
            low = jnp.dot(low_ref[0], wl_ref[...], preferred_element_type=F32) + bl_ref[...]
            high = high_ref[0]                               # conv_high already folded in
            a = (jnp.dot(low.astype(BF16), wal_ref[...], preferred_element_type=F32)
                 + jnp.dot(high.astype(BF16), wah_ref[...], preferred_element_type=F32)
                 + ba_ref[...])
            low_out[0] = low
            high_out[0] = high
            a_out[0] = a
    else:
        def kernel(low_ref, high_ref, wl_ref, bl_ref, wh_ref, bh_ref,
                   wal_ref, wah_ref, ba_ref, low_out, high_out, a_out):
            low = jnp.dot(low_ref[0], wl_ref[...], preferred_element_type=F32) + bl_ref[...]
            high = jnp.dot(high_ref[0], wh_ref[...], preferred_element_type=F32) + bh_ref[...]
            a = (jnp.dot(low.astype(BF16), wal_ref[...], preferred_element_type=F32)
                 + jnp.dot(high.astype(BF16), wah_ref[...], preferred_element_type=F32)
                 + ba_ref[...])
            low_out[0] = low
            high_out[0] = high
            a_out[0] = a
    return kernel


def _make_kernel_b(W, TR, Co, shift, lane_dense_out):
    """Depthwise 3x3 -> sigmoid gate -> gated fusion -> 3x3 fusion conv on one halo'd tile.

    Block layouts (channels on lanes):
        a_ref   : ((TR+4)*W, Co)  GN1+ReLU'ed attention input, 2-row halo (zero at edges)
        lo/hi   : ((TR+2)*W, Co)  conv_low / conv_high outputs, 1-row halo
        out     : (TR, W*Co) lane-dense   or   (TR*W, Co)
    Each 3x3 tap is a pltpu.roll of the flat slab + a column mask; only one tap is live at
    a time (interleaved FMA for the depthwise conv, accumulated K=Co matmuls for fusion)."""
    R2 = TR + 2                                   # rows where attn / fused are needed (tile +/- 1)

    def col_keep(nrows):
        w_idx = jax.lax.broadcasted_iota(jnp.int32, (nrows * W, 1), 0) % W
        return w_idx != 0, w_idx != (W - 1)       # keep-masks for dw = -1 / dw = +1

    def tap(x, dh, dw, nrows, keep_l, keep_r):
        # value at output (block row j//W + 1, col j%W)  ==  x[j + W + dh*W + dw]
        t = shift(x, dh * W + dw)
        t = jax.lax.slice(t, (W, 0), (W + nrows * W, t.shape[1]))
        if dw == -1:
            t = jnp.where(keep_l, t, 0.0)
        elif dw == 1:
            t = jnp.where(keep_r, t, 0.0)
        return t

    def kernel(a_ref, lo_ref, hi_ref, wdw_ref, bdw_ref, wf_ref, bf_ref, out_ref):
        a = a_ref[0]
        # ---- depthwise 3x3 (groups=Co): one shifted tap live at a time, FMA on the VPU
        kl2, kr2 = col_keep(R2)
        wdw = wdw_ref[...]                                    # (9, Co), hoisted load
        dwc = None
        for k in range(9):
            dh, dw = k // 3 - 1, k % 3 - 1
            tk = tap(a, dh, dw, R2, kl2, kr2)
            term = tk * jax.lax.slice(wdw, (k, 0), (k + 1, Co))
            dwc = term if dwc is None else dwc + term
        attn = jax.nn.sigmoid(dwc + bdw_ref[...])

        # ---- gated fusion over the same tile+/-1 rows
        low = lo_ref[0]
        high = hi_ref[0]
        fused = high + attn * (low - high)                    # attn*low + (1-attn)*high

        # ---- fusion 3x3 conv: 9 accumulated K=Co MXU matmuls (no im2col patch slab)
        kl1, kr1 = col_keep(TR)
        wf = wf_ref[...]                                      # (9*Co, Co) bf16, tap-major
        acc = None
        for k in range(9):
            dh, dw = k // 3 - 1, k % 3 - 1
            tk = tap(fused, dh, dw, TR, kl1, kr1).astype(BF16)
            pk = jnp.dot(tk, jax.lax.slice(wf, (k * Co, 0), ((k + 1) * Co, Co)),
                         preferred_element_type=F32)
            acc = pk if acc is None else acc + pk
        y = acc + bf_ref[...]                                 # (TR*W, Co) pre-GroupNorm-2

        if lane_dense_out:
            out_ref[0] = y.reshape(TR, W * Co)                # unmasked vst when Co < 128
        else:
            out_ref[0] = y
    return kernel


# --------------------------------------------------------------------------- public wrapper

def init_afam_params(key, low_channels, high_channels, out_channels):
    """Deterministic synthetic parameters (1x1 weights as (Cin, Cout), attention 1x1 as
    (2*Co, Co) matching torch.cat([low, high]) order, 3x3 weights as (9, Cin, Cout))."""
    ks = jax.random.split(key, 8)

    def w(k, shape, scale=0.1):
        return (scale * jax.random.normal(k, shape)).astype(jnp.float32)

    Co = out_channels
    return {
        "w_low": w(ks[0], (low_channels, Co)),
        "b_low": jnp.zeros((1, Co), jnp.float32),
        "w_high": w(ks[1], (high_channels, Co)),
        "b_high": jnp.zeros((1, Co), jnp.float32),
        "w_att": w(ks[2], (2 * Co, Co)),
        "b_att": w(ks[3], (1, Co), 0.05),
        "gn1_gamma": jnp.ones((1, Co), jnp.float32),
        "gn1_beta": jnp.zeros((1, Co), jnp.float32),
        "w_dw": w(ks[4], (9, 1, Co)),
        "b_dw": jnp.zeros((1, Co), jnp.float32),
        "w_fus": w(ks[5], (9, Co, Co)),
        "b_fus": w(ks[6], (1, Co), 0.05),
        "gn2_gamma": jnp.ones((1, Co), jnp.float32),
        "gn2_beta": jnp.zeros((1, Co), jnp.float32),
    }


def afam_pallas(low_nchw, high_nchw, params, out_channels, row_tile=None):
    """AFAM forward.  NCHW in / NCHW out, matching the PyTorch module."""
    B, Cl, H, W = low_nchw.shape
    _, Ch, Hh, Wh = high_nchw.shape
    Co = out_channels

    TR = _choose_row_tile(H) if row_tile is None else int(row_tile)
    assert H % TR == 0 and (TR == H or TR % 8 == 0), "row_tile must divide H and be 8-aligned"
    NT = H // TR
    grid = (B, NT)
    shift = _row_shift_impl()
    cparams = pltpu.CompilerParams(
        dimension_semantics=("parallel", "parallel"),         # megacore-shardable on v7x
        vmem_limit_bytes=_vmem_limit_bytes())

    # ---- separable bilinear upsample (align_corners=True) in the wrapper.  When Ch >= Co,
    #      conv_high is applied first at coarse resolution (row-stochastic interp rows +
    #      linearity), so no more than Co channels are ever upsampled / carried around.
    Mh = _interp_matrix(H, Hh)
    Mw = _interp_matrix(W, Wh)
    highf = high_nchw.astype(F32)
    project_first = Ch >= Co
    if project_first:
        hp = (jnp.transpose(highf, (0, 2, 3, 1)).reshape(B, Hh * Wh, Ch)
              @ params["w_high"] + params["b_high"]).reshape(B, Hh, Wh, Co)
        high_in = jnp.einsum("hi,wj,bijc->bhwc", Mh, Mw, hp).reshape(B, H * W, Co)
        Chh = Co
    else:
        high_in = jnp.einsum("hi,wj,bcij->bhwc", Mh, Mw, highf).reshape(B, H * W, Ch)
        high_in = high_in.astype(BF16)                        # MXU operand for conv_high
        Chh = Ch
    low_in = jnp.transpose(low_nchw, (0, 2, 3, 1)).reshape(B, H * W, Cl).astype(BF16)

    def tile_spec(c):
        return pl.BlockSpec((1, TR * W, c), lambda b, t: (b, t, 0))

    def full_spec(arr):
        nd = arr.ndim
        return pl.BlockSpec(arr.shape, lambda b, t, _nd=nd: (0,) * _nd)

    # ---- kernel A: per-(batch, row-tile) 1x1 projections + split attention 1x1
    wa = params["w_att"]
    w_list = [params["w_low"].astype(BF16), params["b_low"]]
    if not project_first:
        w_list += [params["w_high"].astype(BF16), params["b_high"]]
    w_list += [wa[:Co].astype(BF16), wa[Co:].astype(BF16), params["b_att"]]

    low_arr, high_arr, a_pre = pl.pallas_call(
        _make_kernel_a(project_first),
        out_shape=(jax.ShapeDtypeStruct((B, H * W, Co), F32),) * 3,
        grid_spec=pltpu.PrefetchScalarGridSpec(
            num_scalar_prefetch=0,
            grid=grid,
            in_specs=[tile_spec(Cl), tile_spec(Chh)] + [full_spec(a) for a in w_list],
            out_specs=[tile_spec(Co), tile_spec(Co), tile_spec(Co)]),
        compiler_params=cparams,
    )(low_in, high_in, *w_list)

    # ---- GroupNorm 1: statistics span the full H*W extent, so they are reduced here at the
    #      split between the two pallas_calls; the affine is folded and applied with the ReLU.
    s1, o1 = _gn_scale_offset(a_pre, params["gn1_gamma"], params["gn1_beta"], NUM_GROUPS)
    a_gn = jnp.maximum(a_pre * s1 + o1, 0.0)

    # ---- overlapping row windows with zero padding at image edges: 2-row halo for the
    #      attention input (depthwise 3x3 then fusion 3x3), 1-row halo for low / high.
    a_halo = _halo_windows(a_gn, H, W, Co, TR, halo=2)
    low_halo = _halo_windows(low_arr, H, W, Co, TR, halo=1)
    high_halo = _halo_windows(high_arr, H, W, Co, TR, halo=1)

    w_dw = params["w_dw"].reshape(9, Co).astype(F32)
    b_dw = params["b_dw"]
    w_fus = params["w_fus"].reshape(9 * Co, Co).astype(BF16)   # tap-major weight layout
    b_fus = params["b_fus"]

    def halo_spec(rows):
        return pl.BlockSpec((1, rows * W, Co), lambda b, t: (b * NT + t, 0, 0))

    def run_kernel_b(lane_dense_out):
        if lane_dense_out:
            out_shape = jax.ShapeDtypeStruct((B, H, W * Co), F32)
            out_spec = pl.BlockSpec((1, TR, W * Co), lambda b, t: (b, t, 0))
        else:
            out_shape = jax.ShapeDtypeStruct((B, H * W, Co), F32)
            out_spec = pl.BlockSpec((1, TR * W, Co), lambda b, t: (b, t, 0))
        y = pl.pallas_call(
            _make_kernel_b(W, TR, Co, shift, lane_dense_out),
            out_shape=out_shape,
            grid_spec=pltpu.PrefetchScalarGridSpec(
                num_scalar_prefetch=0,
                grid=grid,
                in_specs=[halo_spec(TR + 4), halo_spec(TR + 2), halo_spec(TR + 2),
                          full_spec(w_dw), full_spec(b_dw),
                          full_spec(w_fus), full_spec(b_fus)],
                out_specs=out_spec),
            compiler_params=cparams,
        )(a_halo, low_halo, high_halo, w_dw, b_dw, w_fus, b_fus)
        return jax.block_until_ready(y)

    try:
        y = run_kernel_b(lane_dense_out=True)      # lane-dense (W*Co) stores when Co < 128
    except Exception:
        # Mosaic support for the in-kernel (TR*W, Co) -> (TR, W*Co) reshape varies across
        # releases; fall back to channel-minor stores (correct, just masked when Co < 128).
        y = run_kernel_b(lane_dense_out=False)
    y = y.reshape(B, H * W, Co)

    # ---- GroupNorm 2 + ReLU, then back to NCHW to match the PyTorch module
    s2, o2 = _gn_scale_offset(y, params["gn2_gamma"], params["gn2_beta"], NUM_GROUPS)
    out = jnp.maximum(y * s2 + o2, 0.0)
    return jnp.transpose(out.reshape(B, H, W, Co), (0, 3, 1, 2))


# --------------------------------------------------------------------------- reference

def afam_reference(low_nchw, high_nchw, params, out_channels):
    """Pure-JAX f32 reference (same math as the PyTorch module) for verification."""
    B, Cl, H, W = low_nchw.shape
    _, Ch, Hh, Wh = high_nchw.shape
    Co = out_channels
    Mh = _interp_matrix(H, Hh)
    Mw = _interp_matrix(W, Wh)
    high_up = jnp.einsum("bcij,hi,wj->bchw", high_nchw.astype(jnp.float32), Mh, Mw)
    low_n = jnp.transpose(low_nchw, (0, 2, 3, 1)).astype(jnp.float32)
    high_n = jnp.transpose(high_up, (0, 2, 3, 1))
    outs = []
    for b in range(B):
        low = low_n[b].reshape(H * W, Cl) @ params["w_low"] + params["b_low"]
        high = high_n[b].reshape(H * W, Ch) @ params["w_high"] + params["b_high"]
        a = jnp.concatenate([low, high], axis=-1) @ params["w_att"] + params["b_att"]
        a = jnp.maximum(_group_norm(a, params["gn1_gamma"], params["gn1_beta"], NUM_GROUPS), 0.0)
        ap = jnp.pad(a.reshape(H, W, Co), ((1, 1), (1, 1), (0, 0)))
        dwv = jnp.zeros((H, W, Co), jnp.float32)
        for k in range(9):
            kh, kw = k // 3, k % 3
            dwv = dwv + ap[kh:kh + H, kw:kw + W, :] * params["w_dw"][k].reshape(1, 1, Co)
        attn = jax.nn.sigmoid(dwv.reshape(H * W, Co) + params["b_dw"])
        fused = attn * low + (1.0 - attn) * high
        fp = jnp.pad(fused.reshape(H, W, Co), ((1, 1), (1, 1), (0, 0)))
        acc = jnp.zeros((H * W, Co), jnp.float32)
        for k in range(9):
            kh, kw = k // 3, k % 3
            acc = acc + fp[kh:kh + H, kw:kw + W, :].reshape(H * W, Co) @ params["w_fus"][k]
        acc = acc + params["b_fus"]
        out = jnp.maximum(_group_norm(acc, params["gn2_gamma"], params["gn2_beta"], NUM_GROUPS), 0.0)
        outs.append(out.reshape(H, W, Co))
    return jnp.transpose(jnp.stack(outs), (0, 3, 1, 2))


if __name__ == "__main__":
    key = jax.random.PRNGKey(0)
    k1, k2, k3 = jax.random.split(key, 3)

    # shapes consistent with AFAM(low_channels=8, high_channels=16, out_channels=32)
    # (out_channels must be a multiple of 32 because of GroupNorm(32, C))
    B, Cl, Ch, Co = 2, 8, 16, 32
    H = W = 16            # low-level feature spatial size (interpolation target)
    Hh = Wh = 8           # high-level (coarser) feature spatial size

    low_feat = jax.random.normal(k1, (B, Cl, H, W), jnp.float32)     # NCHW, like PyTorch
    high_feat = jax.random.normal(k2, (B, Ch, Hh, Wh), jnp.float32)  # NCHW, like PyTorch
    params = init_afam_params(k3, Cl, Ch, Co)

    # row_tile=8 -> two row tiles per image: exercises the (batch, row-tile) grid + halos
    out = afam_pallas(low_feat, high_feat, params, Co, row_tile=8)
    out = jax.block_until_ready(out)

    assert out.shape == (B, Co, H, W)
    assert bool(jnp.all(jnp.isfinite(out)))

    ref = afam_reference(low_feat, high_feat, params, Co)
    max_err = float(jnp.max(jnp.abs(out - ref)))
    # bf16 MXU operands (f32 accumulation) vs the all-f32 reference
    assert max_err < 8e-2, f"mismatch vs reference: {max_err}"

    print("KERNEL_OK")
</pallas_src>

<mosaic_0001>
module attributes {stable_mosaic.version = 11 : i64} {
  func.func @probe(%arg0: memref<48x32xf32, #tpu.memory_space<vmem>>, %arg1: memref<48x32xf32, #tpu.memory_space<vmem>>) attributes {dimension_semantics = [], scalar_prefetch = 0 : i64, scratch_operands = 0 : i64, tpu.core_type = #tpu.core_type<tc>} {
    %c0 = arith.constant 0 : index
    %c0_0 = arith.constant 0 : index
    %0 = vector.load %arg0[%c0, %c0_0] : memref<48x32xf32, #tpu.memory_space<vmem>>, vector<48x32xf32>
    %c1_i32 = arith.constant 1 : i32
    %1 = tpu.dynamic_rotate %0 by %c1_i32 dim 0 : vector<48x32xf32>, i32 -> vector<48x32xf32>
    %c0_1 = arith.constant 0 : index
    %c0_2 = arith.constant 0 : index
    %2 = vector.load %arg1[%c0_1, %c0_2] : memref<48x32xf32, #tpu.memory_space<vmem>>, vector<48x32xf32>
    tpu.vector_store %arg1[%c0_1, %c0_2], %1 {strides = array<i32>} : memref<48x32xf32, #tpu.memory_space<vmem>>, vector<48x32xf32>,
    return
  }
}

module attributes {stable_mosaic.version = 11 : i64} {
  func.func @kernel(%arg0: i32, %arg1: i32, %arg2: memref<1x128x8xbf16, #tpu.memory_space<vmem>>, %arg3: memref<1x128x16xbf16, #tpu.memory_space<vmem>>, %arg4: memref<8x32xbf16, #tpu.memory_space<vmem>>, %arg5: memref<1x32xf32, #tpu.memory_space<vmem>>, %arg6: memref<16x32xbf16, #tpu.memory_space<vmem>>, %arg7: memref<1x32xf32, #tpu.memory_space<vmem>>, %arg8: memref<32x32xbf16, #tpu.memory_space<vmem>>, %arg9: memref<32x32xbf16, #tpu.memory_space<vmem>>, %arg10: memref<1x32xf32, #tpu.memory_space<vmem>>, %arg11: memref<1x128x32xf32, #tpu.memory_space<vmem>>, %arg12: memref<1x128x32xf32, #tpu.memory_space<vmem>>, %arg13: memref<1x128x32xf32, #tpu.memory_space<vmem>>) attributes {dimension_semantics = [#tpu.dimension_semantics<parallel>, #tpu.dimension_semantics<parallel>], iteration_bounds = array<i64: 2, 2>, scalar_prefetch = 0 : i64, scratch_operands = 0 : i64, tpu.core_type = #tpu.core_type<tc>, window_params = [{transform_indices = @transform_0, window_bounds = array<i64: 1, 128, 8>}, {transform_indices = @transform_1, window_bounds = array<i64: 1, 128, 16>}, {pipeline_mode = #tpu.pipeline_mode<synchronous>, transform_indices = @transform_2, window_bounds = array<i64: 8, 32>}, {pipeline_mode = #tpu.pipeline_mode<synchronous>, transform_indices = @transform_3, window_bounds = array<i64: 1, 32>}, {pipeline_mode = #tpu.pipeline_mode<synchronous>, transform_indices = @transform_4, window_bounds = array<i64: 16, 32>}, {pipeline_mode = #tpu.pipeline_mode<synchronous>, transform_indices = @transform_5, window_bounds = array<i64: 1, 32>}, {pipeline_mode = #tpu.pipeline_mode<synchronous>, transform_indices = @transform_6, window_bounds = array<i64: 32, 32>}, {pipeline_mode = #tpu.pipeline_mode<synchronous>, transform_indices = @transform_7, window_bounds = array<i64: 32, 32>}, {pipeline_mode = #tpu.pipeline_mode<synchronous>, transform_indices = @transform_8, window_bounds = array<i64: 1, 32>}, {transform_indices = @transform_9, window_bounds = array<i64: 1, 128, 32>}, {transform_indices = @transform_10, window_bounds = array<i64: 1, 128, 32>}, {transform_indices = @transform_11, window_bounds = array<i64: 1, 128, 32>}]} {
    %c0 = arith.constant 0 : index
    %c0_0 = arith.constant 0 : index
    %c0_1 = arith.constant 0 : index
    %0 = vector.load %arg2[%c0, %c0_0, %c0_1] : memref<1x128x8xbf16, #tpu.memory_space<vmem>>, vector<1x128x8xbf16>
    %1 = vector.shape_cast %0 : vector<1x128x8xbf16> to vector<128x8xbf16>
    %c0_2 = arith.constant 0 : index
    %c0_3 = arith.constant 0 : index
    %2 = vector.load %arg4[%c0_2, %c0_3] : memref<8x32xbf16, #tpu.memory_space<vmem>>, vector<8x32xbf16>
    %cst = arith.constant dense<0.000000e+00> : vector<128x32xf32>
    %3 = tpu.matmul %1, %2, %cst {dimension_numbers = #tpu.dot_dimension_numbers<[1], [0], [0], [1], [0, 0, 1, 1], [], []>} : vector<128x8xbf16>, vector<8x32xbf16>, vector<128x32xf32> -> vector<128x32xf32>
    %c0_4 = arith.constant 0 : index
    %c0_5 = arith.constant 0 : index
    %4 = vector.load %arg5[%c0_4, %c0_5] : memref<1x32xf32, #tpu.memory_space<vmem>>, vector<1x32xf32>
    %5 = vector.broadcast %4 : vector<1x32xf32> to vector<128x32xf32>
    %6 = arith.addf %3, %5 : vector<128x32xf32>
    %c0_6 = arith.constant 0 : index
    %c0_7 = arith.constant 0 : index
    %c0_8 = arith.constant 0 : index
    %7 = vector.load %arg3[%c0_6, %c0_7, %c0_8] : memref<1x128x16xbf16, #tpu.memory_space<vmem>>, vector<1x128x16xbf16>
    %8 = vector.shape_cast %7 : vector<1x128x16xbf16> to vector<128x16xbf16>
    %c0_9 = arith.constant 0 : index
    %c0_10 = arith.constant 0 : index
    %9 = vector.load %arg6[%c0_9, %c0_10] : memref<16x32xbf16, #tpu.memory_space<vmem>>, vector<16x32xbf16>
    %cst_11 = arith.constant dense<0.000000e+00> : vector<128x32xf32>
    %10 = tpu.matmul %8, %9, %cst_11 {dimension_numbers = #tpu.dot_dimension_numbers<[1], [0], [0], [1], [0, 0, 1, 1], [], []>} : vector<128x16xbf16>, vector<16x32xbf16>, vector<128x32xf32> -> vector<128x32xf32>
    %c0_12 = arith.constant 0 : index
    %c0_13 = arith.constant 0 : index
    %11 = vector.load %arg7[%c0_12, %c0_13] : memref<1x32xf32, #tpu.memory_space<vmem>>, vector<1x32xf32>
    %12 = vector.broadcast %11 : vector<1x32xf32> to vector<128x32xf32>
    %13 = arith.addf %10, %12 : vector<128x32xf32>
    %14 = arith.truncf %6 : vector<128x32xf32> to vector<128x32xbf16>
    %c0_14 = arith.constant 0 : index
    %c0_15 = arith.constant 0 : index
    %15 = vector.load %arg8[%c0_14, %c0_15] : memref<32x32xbf16, #tpu.memory_space<vmem>>, vector<32x32xbf16>
    %cst_16 = arith.constant dense<0.000000e+00> : vector<128x32xf32>
    %16 = tpu.matmul %14, %15, %cst_16 {dimension_numbers = #tpu.dot_dimension_numbers<[1], [0], [0], [1], [0, 0, 1, 1], [], []>} : vector<128x32xbf16>, vector<32x32xbf16>, vector<128x32xf32> -> vector<128x32xf32>
    %17 = arith.truncf %13 : vector<128x32xf32> to vector<128x32xbf16>
    %c0_17 = arith.constant 0 : index
    %c0_18 = arith.constant 0 : index
    %18 = vector.load %arg9[%c0_17, %c0_18] : memref<32x32xbf16, #tpu.memory_space<vmem>>, vector<32x32xbf16>
    %cst_19 = arith.constant dense<0.000000e+00> : vector<128x32xf32>
    %19 = tpu.matmul %17, %18, %cst_19 {dimension_numbers = #tpu.dot_dimension_numbers<[1], [0], [0], [1], [0, 0, 1, 1], [], []>} : vector<128x32xbf16>, vector<32x32xbf16>, vector<128x32xf32> -> vector<128x32xf32>
    %20 = arith.addf %16, %19 : vector<128x32xf32>
    %c0_20 = arith.constant 0 : index
    %c0_21 = arith.constant 0 : index
    %21 = vector.load %arg10[%c0_20, %c0_21] : memref<1x32xf32, #tpu.memory_space<vmem>>, vector<1x32xf32>
    %22 = vector.broadcast %21 : vector<1x32xf32> to vector<128x32xf32>
    %23 = arith.addf %20, %22 : vector<128x32xf32>
    %c0_22 = arith.constant 0 : index
    %c0_23 = arith.constant 0 : index
    %c0_24 = arith.constant 0 : index
    %24 = vector.load %arg11[%c0_22, %c0_23, %c0_24] : memref<1x128x32xf32, #tpu.memory_space<vmem>>, vector<1x128x32xf32>
    %25 = vector.shape_cast %24 : vector<1x128x32xf32> to vector<128x32xf32>
    %26 = vector.shape_cast %6 : vector<128x32xf32> to vector<1x128x32xf32>
    tpu.vector_store %arg11[%c0_22, %c0_23, %c0_24], %26 {strides = array<i32>} : memref<1x128x32xf32, #tpu.memory_space<vmem>>, vector<1x128x32xf32>,
    %c0_25 = arith.constant 0 : index
    %c0_26 = arith.constant 0 : index
    %c0_27 = arith.constant 0 : index
    %27 = vector.load %arg12[%c0_25, %c0_26, %c0_27] : memref<1x128x32xf32, #tpu.memory_space<vmem>>, vector<1x128x32xf32>
    %28 = vector.shape_cast %27 : vector<1x128x32xf32> to vector<128x32xf32>
    %29 = vector.shape_cast %13 : vector<128x32xf32> to vector<1x128x32xf32>
    tpu.vector_store %arg12[%c0_25, %c0_26, %c0_27], %29 {strides = array<i32>} : memref<1x128x32xf32, #tpu.memory_space<vmem>>, vector<1x128x32xf32>,
    %c0_28 = arith.constant 0 : index
    %c0_29 = arith.constant 0 : index
    %c0_30 = arith.constant 0 : index
    %30 = vector.load %arg13[%c0_28, %c0_29, %c0_30] : memref<1x128x32xf32, #tpu.memory_space<vmem>>, vector<1x128x32xf32>
    %31 = vector.shape_cast %30 : vector<1x128x32xf32> to vector<128x32xf32>
    %32 = vector.shape_cast %23 : vector<128x32xf32> to vector<1x128x32xf32>
    tpu.vector_store %arg13[%c0_28, %c0_29, %c0_30], %32 {strides = array<i32>} : memref<1x128x32xf32, #tpu.memory_space<vmem>>, vector<1x128x32xf32>,
    return
  }
  func.func @transform_0(%arg0: i32, %arg1: i32) -> (i32, i32, i32) {
    %c0_i32 = arith.constant 0 : i32
    %c0_i32_0 = arith.constant 0 : i32
    return %arg0, %arg1, %c0_i32 : i32, i32, i32
  }
  func.func @transform_1(%arg0: i32, %arg1: i32) -> (i32, i32, i32) {
    %c0_i32 = arith.constant 0 : i32
    %c0_i32_0 = arith.constant 0 : i32
    return %arg0, %arg1, %c0_i32 : i32, i32, i32
  }
  func.func @transform_2(%arg0: i32, %arg1: i32) -> (i32, i32) {
    %c0_i32 = arith.constant 0 : i32
    %c0_i32_0 = arith.constant 0 : i32
    %c0_i32_1 = arith.constant 0 : i32
    return %c0_i32, %c0_i32_0 : i32, i32
  }
  func.func @transform_3(%arg0: i32, %arg1: i32) -> (i32, i32) {
    %c0_i32 = arith.constant 0 : i32
    %c0_i32_0 = arith.constant 0 : i32
    %c0_i32_1 = arith.constant 0 : i32
    return %c0_i32, %c0_i32_0 : i32, i32
  }
  func.func @transform_4(%arg0: i32, %arg1: i32) -> (i32, i32) {
    %c0_i32 = arith.constant 0 : i32
    %c0_i32_0 = arith.constant 0 : i32
    %c0_i32_1 = arith.constant 0 : i32
    return %c0_i32, %c0_i32_0 : i32, i32
  }
  func.func @transform_5(%arg0: i32, %arg1: i32) -> (i32, i32) {
    %c0_i32 = arith.constant 0 : i32
    %c0_i32_0 = arith.constant 0 : i32
    %c0_i32_1 = arith.constant 0 : i32
    return %c0_i32, %c0_i32_0 : i32, i32
  }
  func.func @transform_6(%arg0: i32, %arg1: i32) -> (i32, i32) {
    %c0_i32 = arith.constant 0 : i32
    %c0_i32_0 = arith.constant 0 : i32
    %c0_i32_1 = arith.constant 0 : i32
    return %c0_i32, %c0_i32_0 : i32, i32
  }
  func.func @transform_7(%arg0: i32, %arg1: i32) -> (i32, i32) {
    %c0_i32 = arith.constant 0 : i32
    %c0_i32_0 = arith.constant 0 : i32
    %c0_i32_1 = arith.constant 0 : i32
    return %c0_i32, %c0_i32_0 : i32, i32
  }
  func.func @transform_8(%arg0: i32, %arg1: i32) -> (i32, i32) {
    %c0_i32 = arith.constant 0 : i32
    %c0_i32_0 = arith.constant 0 : i32
    %c0_i32_1 = arith.constant 0 : i32
    return %c0_i32, %c0_i32_0 : i32, i32
  }
  func.func @transform_9(%arg0: i32, %arg1: i32) -> (i32, i32, i32) {
    %c0_i32 = arith.constant 0 : i32
    %c0_i32_0 = arith.constant 0 : i32
    return %arg0, %arg1, %c0_i32 : i32, i32, i32
  }
  func.func @transform_10(%arg0: i32, %arg1: i32) -> (i32, i32, i32) {
    %c0_i32 = arith.constant 0 : i32
    %c0_i32_0 = arith.constant 0 : i32
    return %arg0, %arg1, %c0_i32 : i32, i32, i32
  }
  func.func @transform_11(%arg0: i32, %arg1: i32) -> (i32, i32, i32) {
    %c0_i32 = arith.constant 0 : i32
    %c0_i32_0 = arith.constant 0 : i32
    return %arg0, %arg1, %c0_i32 : i32, i32, i32
  }
}

</mosaic_0001>

<llo_original>
// kernel: tpu_custom_call.1
$region0: #{tpu_custom_call.1}
  #allocation0 [shape = 'u32[]', space=smem, size = 0x4, offset = 0x4, fixed_abs, tag = 'smem constant byte address 0x4 - core index']
  #allocation1 [shape = 'u32[144,128]{1,0:T(1,128)}', space=vmem, size = 0x12000, scoped, tag = 'internal scratch']
  %s0 = inlined_call_operand.vmem [shape: f32[48,32], index: 0, kind: input, shape index: {}]
  %s1 = inlined_call_operand.vmem [shape: f32[48,32], index: 1, kind: output, shape index: {}]
  %s2 = sld [smem:[#allocation0]]
  $region14: #{tpu_custom_call.1} parent=0
    _
  %s4 = ssub.s32 1, %s2
  %s5 = scalar_select 0, %s4, %s2
  // Predicated region
  $region2: #{tpu_custom_call.1} parent=0 // pred_check
    _
  $region3: #{tpu_custom_call.1} parent=0 // pred_check_branch
    %7 = sbr.rel (0) target = $region5
  $region4: #{tpu_custom_call.1} parent=0 // pred_region
    _
  $region5: #{tpu_custom_call.1} parent=0 // pred_fallthru
    _
  %v8 = vld [vmem:[%s0] sm:$0xff]
  %v9 = vld [vmem:[%s0 + $0x8] sm:$0xff]
  %v10 = vld [vmem:[%s0 + $0x10] sm:$0xff]
  %v11 = vld [vmem:[%s0 + $0x18] sm:$0xff]
  %v12 = vld [vmem:[%s0 + $0x20] sm:$0xff]
  %v13 = vld [vmem:[%s0 + $0x28] sm:$0xff]
  %v14 = vrot.slane %v8, 7
  %v15 = vrot.slane %v9, 7
  %v16 = vrot.slane %v10, 7
  %v17 = vrot.slane %v11, 7
  %v18 = vrot.slane %v12, 7
  %v19 = vrot.slane %v13, 7
  %v20 = vlaneseq
  %v21 = vshrl.u32 %v20, 7
  %vm22 = vcmp.lt.s32.totalorder %v21, 1
  %v23 = vsel %vm22, %v18, %v19
  %v24 = vsel %vm22, %v17, %v18
  %v25 = vsel %vm22, %v16, %v17
  %v26 = vsel %vm22, %v15, %v16
  %v27 = vsel %vm22, %v14, %v15
  %v28 = vsel %vm22, %v19, %v14
  %vm29 = vcmask 261120
  %30 = vst.msk [vmem:[%s1] sm:$0xff] %vm29, %v28
  %31 = vst.msk [vmem:[%s1 + $0x8] sm:$0xff] %vm29, %v27
  %32 = vst.msk [vmem:[%s1 + $0x10] sm:$0xff] %vm29, %v26
  %33 = vst.msk [vmem:[%s1 + $0x18] sm:$0xff] %vm29, %v25
  %34 = vst.msk [vmem:[%s1 + $0x20] sm:$0xff] %vm29, %v24
  %35 = vst.msk [vmem:[%s1 + $0x28] sm:$0xff] %vm29, %v23
  // Predicated region
  $region6: #{tpu_custom_call.1} parent=0 // pred_check
    _
  $region7: #{tpu_custom_call.1} parent=0 // pred_check_branch
    %37 = sbr.rel (0) target = $region9
  $region8: #{tpu_custom_call.1} parent=0 // pred_region
    _
  $region9: #{tpu_custom_call.1} parent=0 // pred_fallthru
    _
  // Predicated region
  $region10: #{tpu_custom_call.1} parent=0 // pred_check
    _
  $region11: #{tpu_custom_call.1} parent=0 // pred_check_branch
    %39 = sbr.rel (0) target = $region13
  $region12: #{tpu_custom_call.1} parent=0 // pred_region
    _
  $region13: #{tpu_custom_call.1} parent=0 // pred_fallthru
    _

// kernel: tpu_custom_call.1
$region0: #{tpu_custom_call.1}
  #allocation0 [shape = 'u32[]', space=smem, size = 0x4, offset = 0x4, fixed_abs, tag = 'smem constant byte address 0x4 - core index']
  #allocation1 [shape = 'u32[144,128]{1,0:T(1,128)}', space=vmem, size = 0x12000, scoped, tag = 'internal scratch']
  %s0 = inlined_call_operand.vmem [shape: bf16[2,256,8], index: 0, kind: input, shape index: {}]
  %s1 = inlined_call_operand.vmem [shape: bf16[2,256,16], index: 1, kind: input, shape index: {}]
  %s2 = inlined_call_operand.vmem [shape: bf16[8,32], index: 2, kind: input, shape index: {}]
  %s3 = inlined_call_operand.vmem [shape: f32[1,32], index: 3, kind: input, shape index: {}]
  %s4 = inlined_call_operand.vmem [shape: bf16[16,32], index: 4, kind: input, shape index: {}]
  %s5 = inlined_call_operand.vmem [shape: f32[1,32], index: 5, kind: input, shape index: {}]
  %s6 = inlined_call_operand.vmem [shape: bf16[32,32], index: 6, kind: input, shape index: {}]
  %s7 = inlined_call_operand.vmem [shape: bf16[32,32], index: 7, kind: input, shape index: {}]
  %s8 = inlined_call_operand.vmem [shape: f32[1,32], index: 8, kind: input, shape index: {}]
  %s9 = inlined_call_operand.vmem [shape: f32[2,256,32], index: 9, kind: output, shape index: {0}]
  %s10 = inlined_call_operand.vmem [shape: f32[2,256,32], index: 10, kind: output, shape index: {1}]
  %s11 = inlined_call_operand.vmem [shape: f32[2,256,32], index: 11, kind: output, shape index: {2}]
  %12 = xla_tuple %s9, %s10, %s11
  %s13 = sld [smem:[#allocation0]]
  $region85: #{tpu_custom_call.1} parent=0
    _
  %s15 = ssub.s32 1, %s13
  %s16 = scalar_select 0, %s15, %s13
  loop: start=0, step=1, limit=6
  $region2: #{tpu_custom_call.1} parent=0 // loop_pre_header
    _
  $region3: #{tpu_custom_call.1} parent=0 // loop_header
    %s18 = sphi 0, %s22
    %p19 = scmp.ge.s32.totalorder %s18, 6
    %s25 = sphi 0, %s37
    %s26 = sphi 0, %s33
    %s27 = sphi 0, %s25
    %s28 = sphi 0, %s26
    %s29 = sphi 0, %s27
    %s30 = sphi 0, %s28
    %s42 = sphi 0, %s44
    %s45 = sphi 0, %s42
    %s46 = sphi 0, %s45
    %s62 = sphi 0, %s46
    %s70 = sphi 0, %s72
    %s73 = sphi 0, %s70
    %s74 = sphi 0, %s73
    %s90 = sphi 0, %s74
    %s94 = sphi 0, %s94
    %s96 = sphi 0, %s94
    %s97 = sphi 0, %s96
    %s111 = sphi 0, %s97
    %s115 = sphi 0, %s115
    %s117 = sphi 0, %s115
    %s118 = sphi 0, %s117
    %s132 = sphi 0, %s118
    %s136 = sphi 0, %s136
    %s138 = sphi 0, %s136
    %s139 = sphi 0, %s138
    %s153 = sphi 0, %s139
    %s157 = sphi 0, %s157
    %s159 = sphi 0, %s157
    %s160 = sphi 0, %s159
    %s174 = sphi 0, %s160
    %s178 = sphi 0, %s178
    %s180 = sphi 0, %s178
    %s181 = sphi 0, %s180
    %s195 = sphi 0, %s181
    %s199 = sphi 0, %s199
    %s201 = sphi 0, %s199
    %s202 = sphi 0, %s201
    %s216 = sphi 0, %s202
    %s220 = sphi 0, %s220
    %s222 = sphi 0, %s220
    %s223 = sphi 0, %s222
    %s237 = sphi 0, %s223
    %s245 = sphi 0, %s247
    %s248 = sphi 0, %s245
    %s249 = sphi 0, %s248
    %s265 = sphi 0, %s249
    %s273 = sphi 0, %s275
    %s276 = sphi 0, %s273
    %s277 = sphi 0, %s276
    %s293 = sphi 0, %s277
    %s301 = sphi 0, %s303
    %s304 = sphi 0, %s301
    %s305 = sphi 0, %s304
    %s321 = sphi 0, %s305
  $region4: #{tpu_custom_call.1} parent=0 // loop_header_branch
    %21 = sbr.rel (%p19) target = $region8
  $region5: #{tpu_custom_call.1} parent=0 // loop_body
    %s23 = ssub.s32 %s18, 1
    %s24 = ssub.s32 %s18, 2
    %s31 = sadd.s32 1, %s26
    %p32 = scmp.ge.s32.totalorder %s31, 2
    %s33 = scalar_select %p32, 0, %s31
    %s34 = sadd.s32 1, %s25
    %s35 = scalar_select %p32, %s34, %s25
    %p36 = scmp.ge.s32.totalorder %s35, 2
    %s37 = scalar_select %p36, 0, %s35
    %s38 = ssub.s32 %s25, %s37
    %s39 = ssub.s32 %s26, %s33
    %s40 = sor.u32 %s38, %s39
    %p41 = scmp.eq.s32.totalorder %s40, 0
    %s43 = sadd.s32 %s42, 1
    %s44 = scalar_select %p41, %s42, %s43
    %p47 = pneg %p41
    %p48 = scmp.eq.s32.totalorder %s18, 3
    %p49 = por %p47, %p48
    %p50 = scmp.ne.s32.totalorder %s42, %s45
    %p51 = scmp.eq.s32.totalorder %s18, 0
    %p52 = por %p50, %p51
    %p53 = scmp.ne.s32.totalorder %s42, %s45
    %p54 = scmp.eq.s32.totalorder %s23, 3
    %p55 = por %p53, %p54
    %p56 = scmp.ne.s32.totalorder %s45, %s46
    %p57 = scmp.eq.s32.totalorder %s23, 0
    %p58 = por %p56, %p57
    %p59 = scmp.ne.s32.totalorder %s45, %s46
    %p60 = scmp.eq.s32.totalorder %s24, 3
    %p61 = por %p59, %p60
    %p63 = scmp.ne.s32.totalorder %s46, %s62
    %p64 = scmp.eq.s32.totalorder %s24, 0
    %p65 = por %p63, %p64
    %s66 = ssub.s32 %s25, %s37
    %s67 = ssub.s32 %s26, %s33
    %s68 = sor.u32 %s66, %s67
    %p69 = scmp.eq.s32.totalorder %s68, 0
    %s71 = sadd.s32 %s70, 1
    %s72 = scalar_select %p69, %s70, %s71
    %p75 = pneg %p69
    %p76 = scmp.eq.s32.totalorder %s18, 3
    %p77 = por %p75, %p76
    %p78 = scmp.ne.s32.totalorder %s70, %s73
    %p79 = scmp.eq.s32.totalorder %s18, 0
    %p80 = por %p78, %p79
    %p81 = scmp.ne.s32.totalorder %s70, %s73
    %p82 = scmp.eq.s32.totalorder %s23, 3
    %p83 = por %p81, %p82
    %p84 = scmp.ne.s32.totalorder %s73, %s74
    %p85 = scmp.eq.s32.totalorder %s23, 0
    %p86 = por %p84, %p85
    %p87 = scmp.ne.s32.totalorder %s73, %s74
    %p88 = scmp.eq.s32.totalorder %s24, 3
    %p89 = por %p87, %p88
    %p91 = scmp.ne.s32.totalorder %s74, %s90
    %p92 = scmp.eq.s32.totalorder %s24, 0
    %p93 = por %p91, %p92
    %s95 = sadd.s32 %s94, 1
    %p98 = scmp.eq.s32.totalorder %s18, 3
    %p99 = scmp.ne.s32.totalorder %s94, %s96
    %p100 = scmp.eq.s32.totalorder %s18, 0
    %p101 = por %p99, %p100
    %p102 = scmp.ne.s32.totalorder %s94, %s96
    %p103 = scmp.eq.s32.totalorder %s23, 3
    %p104 = por %p102, %p103
    %p105 = scmp.ne.s32.totalorder %s96, %s97
    %p106 = scmp.eq.s32.totalorder %s23, 0
    %p107 = por %p105, %p106
    %p108 = scmp.ne.s32.totalorder %s96, %s97
    %p109 = scmp.eq.s32.totalorder %s24, 3
    %p110 = por %p108, %p109
    %p112 = scmp.ne.s32.totalorder %s97, %s111
    %p113 = scmp.eq.s32.totalorder %s24, 0
    %p114 = por %p112, %p113
    %s116 = sadd.s32 %s115, 1
    %p119 = scmp.eq.s32.totalorder %s18, 3
    %p120 = scmp.ne.s32.totalorder %s115, %s117
    %p121 = scmp.eq.s32.totalorder %s18, 0
    %p122 = por %p120, %p121
    %p123 = scmp.ne.s32.totalorder %s115, %s117
    %p124 = scmp.eq.s32.totalorder %s23, 3
    %p125 = por %p123, %p124
    %p126 = scmp.ne.s32.totalorder %s117, %s118
    %p127 = scmp.eq.s32.totalorder %s23, 0
    %p128 = por %p126, %p127
    %p129 = scmp.ne.s32.totalorder %s117, %s118
    %p130 = scmp.eq.s32.totalorder %s24, 3
    %p131 = por %p129, %p130
    %p133 = scmp.ne.s32.totalorder %s118, %s132
    %p134 = scmp.eq.s32.totalorder %s24, 0
    %p135 = por %p133, %p134
    %s137 = sadd.s32 %s136, 1
    %p140 = scmp.eq.s32.totalorder %s18, 3
    %p141 = scmp.ne.s32.totalorder %s136, %s138
    %p142 = scmp.eq.s32.totalorder %s18, 0
    %p143 = por %p141, %p142
    %p144 = scmp.ne.s32.totalorder %s136, %s138
    %p145 = scmp.eq.s32.totalorder %s23, 3
    %p146 = por %p144, %p145
    %p147 = scmp.ne.s32.totalorder %s138, %s139
    %p148 = scmp.eq.s32.totalorder %s23, 0
    %p149 = por %p147, %p148
    %p150 = scmp.ne.s32.totalorder %s138, %s139
    %p151 = scmp.eq.s32.totalorder %s24, 3
    %p152 = por %p150, %p151
    %p154 = scmp.ne.s32.totalorder %s139, %s153
    %p155 = scmp.eq.s32.totalorder %s24, 0
    %p156 = por %p154, %p155
    %s158 = sadd.s32 %s157, 1
    %p161 = scmp.eq.s32.totalorder %s18, 3
    %p162 = scmp.ne.s32.totalorder %s157, %s159
    %p163 = scmp.eq.s32.totalorder %s18, 0
    %p164 = por %p162, %p163
    %p165 = scmp.ne.s32.totalorder %s157, %s159
    %p166 = scmp.eq.s32.totalorder %s23, 3
    %p167 = por %p165, %p166
    %p168 = scmp.ne.s32.totalorder %s159, %s160
    %p169 = scmp.eq.s32.totalorder %s23, 0
    %p170 = por %p168, %p169
    %p171 = scmp.ne.s32.totalorder %s159, %s160
    %p172 = scmp.eq.s32.totalorder %s24, 3
    %p173 = por %p171, %p172
    %p175 = scmp.ne.s32.totalorder %s160, %s174
    %p176 = scmp.eq.s32.totalorder %s24, 0
    %p177 = por %p175, %p176
    %s179 = sadd.s32 %s178, 1
    %p182 = scmp.eq.s32.totalorder %s18, 3
    %p183 = scmp.ne.s32.totalorder %s178, %s180
    %p184 = scmp.eq.s32.totalorder %s18, 0
    %p185 = por %p183, %p184
    %p186 = scmp.ne.s32.totalorder %s178, %s180
    %p187 = scmp.eq.s32.totalorder %s23, 3
    %p188 = por %p186, %p187
    %p189 = scmp.ne.s32.totalorder %s180, %s181
    %p190 = scmp.eq.s32.totalorder %s23, 0
    %p191 = por %p189, %p190
    %p192 = scmp.ne.s32.totalorder %s180, %s181
    %p193 = scmp.eq.s32.totalorder %s24, 3
    %p194 = por %p192, %p193
    %p196 = scmp.ne.s32.totalorder %s181, %s195
    %p197 = scmp.eq.s32.totalorder %s24, 0
    %p198 = por %p196, %p197
    %s200 = sadd.s32 %s199, 1
    %p203 = scmp.eq.s32.totalorder %s18, 3
    %p204 = scmp.ne.s32.totalorder %s199, %s201
    %p205 = scmp.eq.s32.totalorder %s18, 0
    %p206 = por %p204, %p205
    %p207 = scmp.ne.s32.totalorder %s199, %s201
    %p208 = scmp.eq.s32.totalorder %s23, 3
    %p209 = por %p207, %p208
    %p210 = scmp.ne.s32.totalorder %s201, %s202
    %p211 = scmp.eq.s32.totalorder %s23, 0
    %p212 = por %p210, %p211
    %p213 = scmp.ne.s32.totalorder %s201, %s202
    %p214 = scmp.eq.s32.totalorder %s24, 3
    %p215 = por %p213, %p214
    %p217 = scmp.ne.s32.totalorder %s202, %s216
    %p218 = scmp.eq.s32.totalorder %s24, 0
    %p219 = por %p217, %p218
    %s221 = sadd.s32 %s220, 1
    %p224 = scmp.eq.s32.totalorder %s18, 3
    %p225 = scmp.ne.s32.totalorder %s220, %s222
    %p226 = scmp.eq.s32.totalorder %s18, 0
    %p227 = por %p225, %p226
    %p228 = scmp.ne.s32.totalorder %s220, %s222
    %p229 = scmp.eq.s32.totalorder %s23, 3
    %p230 = por %p228, %p229
    %p231 = scmp.ne.s32.totalorder %s222, %s223
    %p232 = scmp.eq.s32.totalorder %s23, 0
    %p233 = por %p231, %p232
    %p234 = scmp.ne.s32.totalorder %s222, %s223
    %p235 = scmp.eq.s32.totalorder %s24, 3
    %p236 = por %p234, %p235
    %p238 = scmp.ne.s32.totalorder %s223, %s237
    %p239 = scmp.eq.s32.totalorder %s24, 0
    %p240 = por %p238, %p239
    %s241 = ssub.s32 %s25, %s37
    %s242 = ssub.s32 %s26, %s33
    %s243 = sor.u32 %s241, %s242
    %p244 = scmp.eq.s32.totalorder %s243, 0
    %s246 = sadd.s32 %s245, 1
    %s247 = scalar_select %p244, %s245, %s246
    %p250 = pneg %p244
    %p251 = scmp.eq.s32.totalorder %s18, 3
    %p252 = por %p250, %p251
    %p253 = scmp.ne.s32.totalorder %s245, %s248
    %p254 = scmp.eq.s32.totalorder %s18, 0
    %p255 = por %p253, %p254
    %p256 = scmp.ne.s32.totalorder %s245, %s248
    %p257 = scmp.eq.s32.totalorder %s23, 3
    %p258 = por %p256, %p257
    %p259 = scmp.ne.s32.totalorder %s248, %s249
    %p260 = scmp.eq.s32.totalorder %s23, 0
    %p261 = por %p259, %p260
    %p262 = scmp.ne.s32.totalorder %s248, %s249
    %p263 = scmp.eq.s32.totalorder %s24, 3
    %p264 = por %p262, %p263
    %p266 = scmp.ne.s32.totalorder %s249, %s265
    %p267 = scmp.eq.s32.totalorder %s24, 0
    %p268 = por %p266, %p267
    %s269 = ssub.s32 %s25, %s37
    %s270 = ssub.s32 %s26, %s33
    %s271 = sor.u32 %s269, %s270
    %p272 = scmp.eq.s32.totalorder %s271, 0
    %s274 = sadd.s32 %s273, 1
    %s275 = scalar_select %p272, %s273, %s274
    %p278 = pneg %p272
    %p279 = scmp.eq.s32.totalorder %s18, 3
    %p280 = por %p278, %p279
    %p281 = scmp.ne.s32.totalorder %s273, %s276
    %p282 = scmp.eq.s32.totalorder %s18, 0
    %p283 = por %p281, %p282
    %p284 = scmp.ne.s32.totalorder %s273, %s276
    %p285 = scmp.eq.s32.totalorder %s23, 3
    %p286 = por %p284, %p285
    %p287 = scmp.ne.s32.totalorder %s276, %s277
    %p288 = scmp.eq.s32.totalorder %s23, 0
    %p289 = por %p287, %p288
    %p290 = scmp.ne.s32.totalorder %s276, %s277
    %p291 = scmp.eq.s32.totalorder %s24, 3
    %p292 = por %p290, %p291
    %p294 = scmp.ne.s32.totalorder %s277, %s293
    %p295 = scmp.eq.s32.totalorder %s24, 0
    %p296 = por %p294, %p295
    %s297 = ssub.s32 %s25, %s37
    %s298 = ssub.s32 %s26, %s33
    %s299 = sor.u32 %s297, %s298
    %p300 = scmp.eq.s32.totalorder %s299, 0
    %s302 = sadd.s32 %s301, 1
    %s303 = scalar_select %p300, %s301, %s302
    %p306 = pneg %p300
    %p307 = scmp.eq.s32.totalorder %s18, 3
    %p308 = por %p306, %p307
    %p309 = scmp.ne.s32.totalorder %s301, %s304
    %p310 = scmp.eq.s32.totalorder %s18, 0
    %p311 = por %p309, %p310
    %p312 = scmp.ne.s32.totalorder %s301, %s304
    %p313 = scmp.eq.s32.totalorder %s23, 3
    %p314 = por %p312, %p313
    %p315 = scmp.ne.s32.totalorder %s304, %s305
    %p316 = scmp.eq.s32.totalorder %s23, 0
    %p317 = por %p315, %p316
    %p318 = scmp.ne.s32.totalorder %s304, %s305
    %p319 = scmp.eq.s32.totalorder %s24, 3
    %p320 = por %p318, %p319
    %p322 = scmp.ne.s32.totalorder %s305, %s321
    %p323 = scmp.eq.s32.totalorder %s24, 0
    %p324 = por %p322, %p323
    %p325 = scmp.le.s32.totalorder 1, %s18
    %p326 = scmp.lt.s32.totalorder %s18, 5
    %p327 = pnand %p325, %p326
    %p328 = pneg %p327
    // Predicated region
    $region9: #{tpu_custom_call.1} parent=5 // pred_check
      _
    $region10: #{tpu_custom_call.1} parent=5 // pred_check_branch
      %330 = sbr.rel (%p327) target = $region12
    $region11: #{tpu_custom_call.1} parent=5 // pred_region
      %s331 = ssub.s32 %s18, 1
      // Predicated region
      $region13: #{tpu_custom_call.1} parent=11 // pred_check
        %p332 = pneg %p107
      $region14: #{tpu_custom_call.1} parent=11 // pred_check_branch
        %334 = sbr.rel (%p332) target = $region16
      $region15: #{tpu_custom_call.1} parent=11 // pred_region
        _
      $region16: #{tpu_custom_call.1} parent=11 // pred_fallthru
        _
      // Predicated region
      $region17: #{tpu_custom_call.1} parent=11 // pred_check
        %p335 = pneg %p128
      $region18: #{tpu_custom_call.1} parent=11 // pred_check_branch
        %337 = sbr.rel (%p335) target = $region20
      $region19: #{tpu_custom_call.1} parent=11 // pred_region
        _
      $region20: #{tpu_custom_call.1} parent=11 // pred_fallthru
        _
      // Predicated region
      $region21: #{tpu_custom_call.1} parent=11 // pred_check
        %p338 = pneg %p149
      $region22: #{tpu_custom_call.1} parent=11 // pred_check_branch
        %340 = sbr.rel (%p338) target = $region24
      $region23: #{tpu_custom_call.1} parent=11 // pred_region
        _
      $region24: #{tpu_custom_call.1} parent=11 // pred_fallthru
        _
      // Predicated region
      $region25: #{tpu_custom_call.1} parent=11 // pred_check
        %p341 = pneg %p170
      $region26: #{tpu_custom_call.1} parent=11 // pred_check_branch
        %343 = sbr.rel (%p341) target = $region28
      $region27: #{tpu_custom_call.1} parent=11 // pred_region
        _
      $region28: #{tpu_custom_call.1} parent=11 // pred_fallthru
        _
      // Predicated region
      $region29: #{tpu_custom_call.1} parent=11 // pred_check
        %p344 = pneg %p191
      $region30: #{tpu_custom_call.1} parent=11 // pred_check_branch
        %346 = sbr.rel (%p344) target = $region32
      $region31: #{tpu_custom_call.1} parent=11 // pred_region
        _
      $region32: #{tpu_custom_call.1} parent=11 // pred_fallthru
        _
      // Predicated region
      $region33: #{tpu_custom_call.1} parent=11 // pred_check
        %p347 = pneg %p212
      $region34: #{tpu_custom_call.1} parent=11 // pred_check_branch
        %349 = sbr.rel (%p347) target = $region36
      $region35: #{tpu_custom_call.1} parent=11 // pred_region
        _
      $region36: #{tpu_custom_call.1} parent=11 // pred_fallthru
        _
      // Predicated region
      $region37: #{tpu_custom_call.1} parent=11 // pred_check
        %p350 = pneg %p233
      $region38: #{tpu_custom_call.1} parent=11 // pred_check_branch
        %352 = sbr.rel (%p350) target = $region40
      $region39: #{tpu_custom_call.1} parent=11 // pred_region
        _
      $region40: #{tpu_custom_call.1} parent=11 // pred_fallthru
        _
    $region12: #{tpu_custom_call.1} parent=5 // pred_fallthru
      _
    %p353 = scmp.lt.s32.totalorder %s18, 4
    // Predicated region
    $region41: #{tpu_custom_call.1} parent=5 // pred_check
      %p354 = pneg %p353
    $region42: #{tpu_custom_call.1} parent=5 // pred_check_branch
      %356 = sbr.rel (%p354) target = $region44
    $region43: #{tpu_custom_call.1} parent=5 // pred_region
      // Predicated region
      $region45: #{tpu_custom_call.1} parent=43 // pred_check
        %p357 = pneg %p52
      $region46: #{tpu_custom_call.1} parent=43 // pred_check_branch
        %359 = sbr.rel (%p357) target = $region48
      $region47: #{tpu_custom_call.1} parent=43 // pred_region
        %s360 = smul.u32 16, %s26
        %p361 = scmp.lt.s32.totalorder %s25, 1
        %s362 = scalar_select %p361, %s25, 1
        %p363 = scmp.lt.s32.totalorder %s360, 31
        %s364 = scalar_select %p363, %s360, 31
        %s365 = smul.addr %s362, 32
        %s366 = sadd.s32 %s364, %s365
        %s367 = smul.addr %s366, 4
        %s368 = scalar_lea.vmem %s0, %s367
        %s369 = smul.u32 16, %s26
      $region48: #{tpu_custom_call.1} parent=43 // pred_fallthru
        _
      // Predicated region
      $region49: #{tpu_custom_call.1} parent=43 // pred_check
        %p370 = pneg %p80
      $region50: #{tpu_custom_call.1} parent=43 // pred_check_branch
        %372 = sbr.rel (%p370) target = $region52
      $region51: #{tpu_custom_call.1} parent=43 // pred_region
        %s373 = smul.u32 16, %s26
        %p374 = scmp.lt.s32.totalorder %s25, 1
        %s375 = scalar_select %p374, %s25, 1
        %p376 = scmp.lt.s32.totalorder %s373, 31
        %s377 = scalar_select %p376, %s373, 31
        %s378 = smul.addr %s375, 32
        %s379 = sadd.s32 %s377, %s378
        %s380 = smul.addr %s379, 4
        %s381 = scalar_lea.vmem %s1, %s380
        %s382 = smul.u32 16, %s26
      $region52: #{tpu_custom_call.1} parent=43 // pred_fallthru
        _
    $region44: #{tpu_custom_call.1} parent=5 // pred_fallthru
      _
    %p383 = scmp.le.s32.totalorder 1, %s18
    %p384 = scmp.lt.s32.totalorder %s18, 5
    %p385 = pnand %p383, %p384
    %p386 = pneg %p385
    // Predicated region
    $region53: #{tpu_custom_call.1} parent=5 // pred_check
      _
    $region54: #{tpu_custom_call.1} parent=5 // pred_check_branch
      %388 = sbr.rel (%p385) target = $region56
    $region55: #{tpu_custom_call.1} parent=5 // pred_region
      %s389 = ssub.s32 %s18, 1
      %s390 = smul.u32 16, %s28
      %p391 = scmp.lt.s32.totalorder %s27, 1
      %s392 = scalar_select %p391, %s27, 1
      %p393 = scmp.lt.s32.totalorder %s390, 31
      %s394 = scalar_select %p393, %s390, 31
      %s395 = smul.addr %s392, 32
      %s396 = sadd.s32 %s394, %s395
      %s397 = smul.addr %s396, 4
      %s398 = scalar_lea.vmem %s0, %s397
      %p399 = pneg %p58
      %p400 = pneg %p55
      %s401 = smul.u32 16, %s28
      %p402 = scmp.lt.s32.totalorder %s27, 1
      %s403 = scalar_select %p402, %s27, 1
      %p404 = scmp.lt.s32.totalorder %s401, 31
      %s405 = scalar_select %p404, %s401, 31
      %s406 = smul.addr %s403, 32
      %s407 = sadd.s32 %s405, %s406
      %s408 = smul.addr %s407, 4
      %s409 = scalar_lea.vmem %s1, %s408
      %p410 = pneg %p86
      %p411 = pneg %p83
      %p412 = pneg %p107
      %p413 = pneg %p104
      %p414 = pneg %p128
      %p415 = pneg %p125
      %p416 = pneg %p149
      %p417 = pneg %p146
      %p418 = pneg %p170
      %p419 = pneg %p167
      %p420 = pneg %p191
      %p421 = pneg %p188
      %p422 = pneg %p212
      %p423 = pneg %p209
      %p424 = pneg %p233
      %p425 = pneg %p230
      %p426 = pneg %p261
      %p427 = pneg %p258
      %s428 = smul.u32 16, %s28
      %p429 = scmp.lt.s32.totalorder %s27, 1
      %s430 = scalar_select %p429, %s27, 1
      %p431 = scmp.lt.s32.totalorder %s428, 31
      %s432 = scalar_select %p431, %s428, 31
      %s433 = smul.addr %s430, 32
      %s434 = sadd.s32 %s432, %s433
      %s435 = smul.addr %s434, 8
      %s436 = scalar_lea.vmem %s9, %s435
      %p437 = pneg %p289
      %p438 = pneg %p286
      %s439 = smul.u32 16, %s28
      %p440 = scmp.lt.s32.totalorder %s27, 1
      %s441 = scalar_select %p440, %s27, 1
      %p442 = scmp.lt.s32.totalorder %s439, 31
      %s443 = scalar_select %p442, %s439, 31
      %s444 = smul.addr %s441, 32
      %s445 = sadd.s32 %s443, %s444
      %s446 = smul.addr %s445, 8
      %s447 = scalar_lea.vmem %s10, %s446
      %p448 = pneg %p317
      %p449 = pneg %p314
      %s450 = smul.u32 16, %s28
      %p451 = scmp.lt.s32.totalorder %s27, 1
      %s452 = scalar_select %p451, %s27, 1
      %p453 = scmp.lt.s32.totalorder %s450, 31
      %s454 = scalar_select %p453, %s450, 31
      %s455 = smul.addr %s452, 32
      %s456 = sadd.s32 %s454, %s455
      %s457 = smul.addr %s456, 8
      %s458 = scalar_lea.vmem %s11, %s457
      %s459 = smul.u32 16, %s28
      %p460 = scmp.lt.s32.totalorder %s27, 1
      %s461 = scalar_select %p460, %s27, 1
      %p462 = scmp.lt.s32.totalorder %s459, 31
      %s463 = scalar_select %p462, %s459, 31
      %s464 = smul.addr %s461, 32
      %s465 = sadd.s32 %s463, %s464
      %s466 = smul.addr %s465, 4
      %s467 = scalar_lea.vmem %s0, %s466
      %s468 = smul.u32 16, %s28
      %s469 = smul.u32 16, %s28
      %p470 = scmp.lt.s32.totalorder %s27, 1
      %s471 = scalar_select %p470, %s27, 1
      %p472 = scmp.lt.s32.totalorder %s469, 31
      %s473 = scalar_select %p472, %s469, 31
      %s474 = smul.addr %s471, 32
      %s475 = sadd.s32 %s473, %s474
      %s476 = smul.addr %s475, 4
      %s477 = scalar_lea.vmem %s1, %s476
      %s478 = smul.u32 16, %s28
      %s479 = smul.u32 16, %s28
      %p480 = scmp.lt.s32.totalorder %s27, 1
      %s481 = scalar_select %p480, %s27, 1
      %p482 = scmp.lt.s32.totalorder %s479, 31
      %s483 = scalar_select %p482, %s479, 31
      %s484 = smul.addr %s481, 32
      %s485 = sadd.s32 %s483, %s484
      %s486 = smul.addr %s485, 8
      %s487 = scalar_lea.vmem %s9, %s486
      %s488 = smul.u32 16, %s28
      %s489 = smul.u32 16, %s28
      %p490 = scmp.lt.s32.totalorder %s27, 1
      %s491 = scalar_select %p490, %s27, 1
      %p492 = scmp.lt.s32.totalorder %s489, 31
      %s493 = scalar_select %p492, %s489, 31
      %s494 = smul.addr %s491, 32
      %s495 = sadd.s32 %s493, %s494
      %s496 = smul.addr %s495, 8
      %s497 = scalar_lea.vmem %s10, %s496
      %s498 = smul.u32 16, %s28
      %s499 = smul.u32 16, %s28
      %p500 = scmp.lt.s32.totalorder %s27, 1
      %s501 = scalar_select %p500, %s27, 1
      %p502 = scmp.lt.s32.totalorder %s499, 31
      %s503 = scalar_select %p502, %s499, 31
      %s504 = smul.addr %s501, 32
      %s505 = sadd.s32 %s503, %s504
      %s506 = smul.addr %s505, 8
      %s507 = scalar_lea.vmem %s11, %s506
      %s508 = smul.u32 16, %s28
      %v510 = vld [vmem:[%s467] sm:$0xf]
      %v511 = vld [vmem:[%s467 + $0x4] sm:$0xf]
      %v512 = vld [vmem:[%s467 + $0x8] sm:$0xf]
      %v513 = vld [vmem:[%s467 + $0xc] sm:$0xf]
      %v514 = vld [vmem:[%s467 + $0x10] sm:$0xf]
      %v515 = vld [vmem:[%s467 + $0x14] sm:$0xf]
      %v516 = vld [vmem:[%s467 + $0x18] sm:$0xf]
      %v517 = vld [vmem:[%s467 + $0x1c] sm:$0xf]
      %v518 = vld [vmem:[%s467 + $0x20] sm:$0xf]
      %v519 = vld [vmem:[%s467 + $0x24] sm:$0xf]
      %v520 = vld [vmem:[%s467 + $0x28] sm:$0xf]
      %v521 = vld [vmem:[%s467 + $0x2c] sm:$0xf]
      %v522 = vld [vmem:[%s467 + $0x30] sm:$0xf]
      %v523 = vld [vmem:[%s467 + $0x34] sm:$0xf]
      %v524 = vld [vmem:[%s467 + $0x38] sm:$0xf]
      %v525 = vld [vmem:[%s467 + $0x3c] sm:$0xf]
      %v526 = vld [vmem:[%s2] sm:$0xf]
      %v527 = vld [vmem:[%s3] sm:$0x1]
      %v529 = vlaneseq
      %v530 = vshrl.u32 %v529, 7
      %v531 = vsub.s32 0, %v530
      %v532 = vrot.slane %v527, %v531
      %v550 = vunpack.c.l.b16 %v510
      %v551 = vunpack.c.l.b16 %v511
      %v552 = vunpack.c.l.b16 %v512
      %v553 = vunpack.c.l.b16 %v513
      %v554 = vunpack.c.l.b16 %v514
      %v555 = vunpack.c.l.b16 %v515
      %v556 = vunpack.c.l.b16 %v516
      %v557 = vunpack.c.l.b16 %v517
      %v558 = vunpack.c.l.b16 %v518
      %v559 = vunpack.c.l.b16 %v519
      %v560 = vunpack.c.l.b16 %v520
      %v561 = vunpack.c.l.b16 %v521
      %v562 = vunpack.c.l.b16 %v522
      %v563 = vunpack.c.l.b16 %v523
      %v564 = vunpack.c.l.b16 %v524
      %v565 = vunpack.c.l.b16 %v525
      %v566 = vpack.c.b16 %v551, %v550
      %v567 = vpack.c.b16 %v553, %v552
      %v568 = vpack.c.b16 %v555, %v554
      %v569 = vpack.c.b16 %v557, %v556
      %v570 = vpack.c.b16 %v559, %v558
      %v571 = vpack.c.b16 %v561, %v560
      %v572 = vpack.c.b16 %v563, %v562
      %v573 = vpack.c.b16 %v565, %v564
      %vm574 = vcmask 64512
      %v576 = vsel %vm574, %v566, 0
      %v579 = vsel %vm574, %v567, 0
      %v582 = vsel %vm574, %v568, 0
      %v585 = vsel %vm574, %v569, 0
      %v588 = vsel %vm574, %v570, 0
      %v591 = vsel %vm574, %v571, 0
      %v594 = vsel %vm574, %v572, 0
      %v597 = vsel %vm574, %v573, 0
      %vm599 = vcmask 1043456
      %v601 = vsel %vm599, %v526, 0
      %603 = vmatprep.subr.bf16.mxu0 0
      %604 = vmatpush1.bf16.msra.mxu0 0
      %605 = vmatprep.subr.bf16.mxu0 0
      %606 = vmatpush1.bf16.msra.mxu0 0
      %607 = vmatprep.subr.bf16.mxu0 0
      %608 = vmatpush1.bf16.msra.mxu0 0
      %609 = vmatprep.subr.bf16.mxu0 0
      %610 = vmatpush1.bf16.msra.mxu0 0
      %611 = vmatprep.subr.bf16.mxu0 0
      %612 = vmatpush1.bf16.msra.mxu0 0
      %613 = vmatprep.subr.bf16.mxu0 0
      %614 = vmatpush1.bf16.msra.mxu0 0
      %615 = vmatprep.subr.bf16.mxu0 0
      %616 = vmatpush1.bf16.msra.mxu0 0
      %617 = vmatprep.subr.bf16.mxu0 0
      %618 = vmatpush1.bf16.msra.mxu0 %v601
      %619 = vmatprep.subr.bf16.mxu0 0
      %620 = vmatpush2.bf16.msra.mxu0 0
      %621 = vmatprep.subr.bf16.mxu0 0
      %622 = vmatpush2.bf16.msra.mxu0 0
      %623 = vmatprep.subr.bf16.mxu0 0
      %624 = vmatpush2.bf16.msra.mxu0 0
      %625 = vmatprep.subr.bf16.mxu0 0
      %626 = vmatpush2.bf16.msra.mxu0 0
      %627 = vmatprep.subr.bf16.mxu0 0
      %628 = vmatpush2.bf16.msra.mxu0 0
      %629 = vmatprep.subr.bf16.mxu0 0
      %630 = vmatpush2.bf16.msra.mxu0 0
      %631 = vmatprep.subr.bf16.mxu0 0
      %632 = vmatpush2.bf16.msra.mxu0 0
      %633 = vmatprep.subr.bf16.mxu0 0
      %634 = vmatpush2.bf16.msra.mxu0 0
      %635 = vmatprep.mubr.bf16.mxu0 0
      %636 = vmatmul.mubr.bf16.gmra.mxu0 %v576
      %v637 = vpop.f32.mrf.mxu0
      %v638 = vadd.f32 %v532, %v637
      %v639 = vpop.f32.mrf.mxu0
      %v640 = vpop.f32.mrf.mxu0
      %v641 = vadd.f32 %v532, %v640
      %v642 = vpop.f32.mrf.mxu0
      %643 = vmatprep.mubr.bf16.mxu0 0
      %644 = vmatmul.mubr.bf16.gmra.mxu0 %v579
      %v645 = vpop.f32.mrf.mxu0
      %v646 = vadd.f32 %v532, %v645
      %v647 = vpop.f32.mrf.mxu0
      %v648 = vpop.f32.mrf.mxu0
      %v649 = vadd.f32 %v532, %v648
      %v650 = vpop.f32.mrf.mxu0
      %651 = vmatprep.mubr.bf16.mxu0 0
      %652 = vmatmul.mubr.bf16.gmra.mxu0 %v582
      %v653 = vpop.f32.mrf.mxu0
      %v654 = vadd.f32 %v532, %v653
      %v655 = vpop.f32.mrf.mxu0
      %v656 = vpop.f32.mrf.mxu0
      %v657 = vadd.f32 %v532, %v656
      %v658 = vpop.f32.mrf.mxu0
      %659 = vmatprep.mubr.bf16.mxu0 0
      %660 = vmatmul.mubr.bf16.gmra.mxu0 %v585
      %v661 = vpop.f32.mrf.mxu0
      %v662 = vadd.f32 %v532, %v661
      %v663 = vpop.f32.mrf.mxu0
      %v664 = vpop.f32.mrf.mxu0
      %v665 = vadd.f32 %v532, %v664
      %v666 = vpop.f32.mrf.mxu0
      %667 = vmatprep.mubr.bf16.mxu0 0
      %668 = vmatmul.mubr.bf16.gmra.mxu0 %v588
      %v669 = vpop.f32.mrf.mxu0
      %v670 = vadd.f32 %v532, %v669
      %v671 = vpop.f32.mrf.mxu0
      %v672 = vpop.f32.mrf.mxu0
      %v673 = vadd.f32 %v532, %v672
      %v674 = vpop.f32.mrf.mxu0
      %675 = vmatprep.mubr.bf16.mxu0 0
      %676 = vmatmul.mubr.bf16.gmra.mxu0 %v591
      %v677 = vpop.f32.mrf.mxu0
      %v678 = vadd.f32 %v532, %v677
      %v679 = vpop.f32.mrf.mxu0
      %v680 = vpop.f32.mrf.mxu0
      %v681 = vadd.f32 %v532, %v680
      %v682 = vpop.f32.mrf.mxu0
      %683 = vmatprep.mubr.bf16.mxu0 0
      %684 = vmatmul.mubr.bf16.gmra.mxu0 %v594
      %v685 = vpop.f32.mrf.mxu0
      %v686 = vadd.f32 %v532, %v685
      %v687 = vpop.f32.mrf.mxu0
      %v688 = vpop.f32.mrf.mxu0
      %v689 = vadd.f32 %v532, %v688
      %v690 = vpop.f32.mrf.mxu0
      %691 = vmatprep.mubr.bf16.mxu0 0
      %692 = vmatmul.mubr.bf16.gmra.mxu0 %v597
      %v693 = vpop.f32.mrf.mxu0
      %v694 = vadd.f32 %v532, %v693
      %v695 = vpop.f32.mrf.mxu0
      %v696 = vpop.f32.mrf.mxu0
      %v697 = vadd.f32 %v532, %v696
      %v698 = vpop.f32.mrf.mxu0
      %699 = vdwg.mxu0
      %v700 = vld [vmem:[%s477] sm:$0xf]
      %v701 = vld [vmem:[%s477 + $0x4] sm:$0xf]
      %v702 = vld [vmem:[%s477 + $0x8] sm:$0xf]
      %v703 = vld [vmem:[%s477 + $0xc] sm:$0xf]
      %v704 = vld [vmem:[%s477 + $0x10] sm:$0xf]
      %v705 = vld [vmem:[%s477 + $0x14] sm:$0xf]
      %v706 = vld [vmem:[%s477 + $0x18] sm:$0xf]
      %v707 = vld [vmem:[%s477 + $0x1c] sm:$0xf]
      %v708 = vld [vmem:[%s477 + $0x20] sm:$0xf]
      %v709 = vld [vmem:[%s477 + $0x24] sm:$0xf]
      %v710 = vld [vmem:[%s477 + $0x28] sm:$0xf]
      %v711 = vld [vmem:[%s477 + $0x2c] sm:$0xf]
      %v712 = vld [vmem:[%s477 + $0x30] sm:$0xf]
      %v713 = vld [vmem:[%s477 + $0x34] sm:$0xf]
      %v714 = vld [vmem:[%s477 + $0x38] sm:$0xf]
      %v715 = vld [vmem:[%s477 + $0x3c] sm:$0xf]
      %v716 = vld [vmem:[%s4] sm:$0xf]
      %v717 = vld [vmem:[%s4 + $0x4] sm:$0xf]
      %v718 = vld [vmem:[%s5] sm:$0x1]
      %v720 = vlaneseq
      %v721 = vshrl.u32 %v720, 7
      %v722 = vsub.s32 0, %v721
      %v723 = vrot.slane %v718, %v722
      %v741 = vunpack.c.l.b16 %v700
      %v742 = vunpack.c.l.b16 %v701
      %v743 = vunpack.c.l.b16 %v702
      %v744 = vunpack.c.l.b16 %v703
      %v745 = vunpack.c.l.b16 %v704
      %v746 = vunpack.c.l.b16 %v705
      %v747 = vunpack.c.l.b16 %v706
      %v748 = vunpack.c.l.b16 %v707
      %v749 = vunpack.c.l.b16 %v708
      %v750 = vunpack.c.l.b16 %v709
      %v751 = vunpack.c.l.b16 %v710
      %v752 = vunpack.c.l.b16 %v711
      %v753 = vunpack.c.l.b16 %v712
      %v754 = vunpack.c.l.b16 %v713
      %v755 = vunpack.c.l.b16 %v714
      %v756 = vunpack.c.l.b16 %v715
      %v757 = vpack.c.b16 %v742, %v741
      %v758 = vpack.c.b16 %v744, %v743
      %v759 = vpack.c.b16 %v746, %v745
      %v760 = vpack.c.b16 %v748, %v747
      %v761 = vpack.c.b16 %v750, %v749
      %v762 = vpack.c.b16 %v752, %v751
      %v763 = vpack.c.b16 %v754, %v753
      %v764 = vpack.c.b16 %v756, %v755
      %v767 = vunpack.c.l.b16 %v716
      %v768 = vunpack.c.l.b16 %v717
      %v769 = vpack.c.b16 %v768, %v767
      %vm771 = vcmask 130048
      %v773 = vsel %vm771, %v757, 0
      %v776 = vsel %vm771, %v758, 0
      %v779 = vsel %vm771, %v759, 0
      %v782 = vsel %vm771, %v760, 0
      %v785 = vsel %vm771, %v761, 0
      %v788 = vsel %vm771, %v762, 0
      %v791 = vsel %vm771, %v763, 0
      %v794 = vsel %vm771, %v764, 0
      %796 = vmatprep.subr.bf16.mxu0 0
      %797 = vmatpush1.bf16.msra.mxu0 0
      %798 = vmatprep.subr.bf16.mxu0 0
      %799 = vmatpush1.bf16.msra.mxu0 0
      %800 = vmatprep.subr.bf16.mxu0 0
      %801 = vmatpush1.bf16.msra.mxu0 0
      %802 = vmatprep.subr.bf16.mxu0 0
      %803 = vmatpush1.bf16.msra.mxu0 0
      %804 = vmatprep.subr.bf16.mxu0 0
      %805 = vmatpush1.bf16.msra.mxu0 0
      %806 = vmatprep.subr.bf16.mxu0 0
      %807 = vmatpush1.bf16.msra.mxu0 0
      %808 = vmatprep.subr.bf16.mxu0 0
      %809 = vmatpush1.bf16.msra.mxu0 0
      %810 = vmatprep.subr.bf16.mxu0 0
      %811 = vmatpush1.bf16.msra.mxu0 %v769
      %812 = vmatprep.subr.bf16.mxu0 0
      %813 = vmatpush2.bf16.msra.mxu0 0
      %814 = vmatprep.subr.bf16.mxu0 0
      %815 = vmatpush2.bf16.msra.mxu0 0
      %816 = vmatprep.subr.bf16.mxu0 0
      %817 = vmatpush2.bf16.msra.mxu0 0
      %818 = vmatprep.subr.bf16.mxu0 0
      %819 = vmatpush2.bf16.msra.mxu0 0
      %820 = vmatprep.subr.bf16.mxu0 0
      %821 = vmatpush2.bf16.msra.mxu0 0
      %822 = vmatprep.subr.bf16.mxu0 0
      %823 = vmatpush2.bf16.msra.mxu0 0
      %824 = vmatprep.subr.bf16.mxu0 0
      %825 = vmatpush2.bf16.msra.mxu0 0
      %826 = vmatprep.subr.bf16.mxu0 0
      %827 = vmatpush2.bf16.msra.mxu0 0
      %828 = vmatprep.mubr.bf16.mxu0 0
      %829 = vmatmul.mubr.bf16.gmra.mxu0 %v773
      %v830 = vpop.f32.mrf.mxu0
      %v831 = vadd.f32 %v723, %v830
      %v832 = vpop.f32.mrf.mxu0
      %v833 = vpop.f32.mrf.mxu0
      %v834 = vadd.f32 %v723, %v833
      %v835 = vpop.f32.mrf.mxu0
      %836 = vmatprep.mubr.bf16.mxu0 0
      %837 = vmatmul.mubr.bf16.gmra.mxu0 %v776
      %v838 = vpop.f32.mrf.mxu0
      %v839 = vadd.f32 %v723, %v838
      %v840 = vpop.f32.mrf.mxu0
      %v841 = vpop.f32.mrf.mxu0
      %v842 = vadd.f32 %v723, %v841
      %v843 = vpop.f32.mrf.mxu0
      %844 = vmatprep.mubr.bf16.mxu0 0
      %845 = vmatmul.mubr.bf16.gmra.mxu0 %v779
      %v846 = vpop.f32.mrf.mxu0
      %v847 = vadd.f32 %v723, %v846
      %v848 = vpop.f32.mrf.mxu0
      %v849 = vpop.f32.mrf.mxu0
      %v850 = vadd.f32 %v723, %v849
      %v851 = vpop.f32.mrf.mxu0
      %852 = vmatprep.mubr.bf16.mxu0 0
      %853 = vmatmul.mubr.bf16.gmra.mxu0 %v782
      %v854 = vpop.f32.mrf.mxu0
      %v855 = vadd.f32 %v723, %v854
      %v856 = vpop.f32.mrf.mxu0
      %v857 = vpop.f32.mrf.mxu0
      %v858 = vadd.f32 %v723, %v857
      %v859 = vpop.f32.mrf.mxu0
      %860 = vmatprep.mubr.bf16.mxu0 0
      %861 = vmatmul.mubr.bf16.gmra.mxu0 %v785
      %v862 = vpop.f32.mrf.mxu0
      %v863 = vadd.f32 %v723, %v862
      %v864 = vpop.f32.mrf.mxu0
      %v865 = vpop.f32.mrf.mxu0
      %v866 = vadd.f32 %v723, %v865
      %v867 = vpop.f32.mrf.mxu0
      %868 = vmatprep.mubr.bf16.mxu0 0
      %869 = vmatmul.mubr.bf16.gmra.mxu0 %v788
      %v870 = vpop.f32.mrf.mxu0
      %v871 = vadd.f32 %v723, %v870
      %v872 = vpop.f32.mrf.mxu0
      %v873 = vpop.f32.mrf.mxu0
      %v874 = vadd.f32 %v723, %v873
      %v875 = vpop.f32.mrf.mxu0
      %876 = vmatprep.mubr.bf16.mxu0 0
      %877 = vmatmul.mubr.bf16.gmra.mxu0 %v791
      %v878 = vpop.f32.mrf.mxu0
      %v879 = vadd.f32 %v723, %v878
      %v880 = vpop.f32.mrf.mxu0
      %v881 = vpop.f32.mrf.mxu0
      %v882 = vadd.f32 %v723, %v881
      %v883 = vpop.f32.mrf.mxu0
      %884 = vmatprep.mubr.bf16.mxu0 0
      %885 = vmatmul.mubr.bf16.gmra.mxu0 %v794
      %v886 = vpop.f32.mrf.mxu0
      %v887 = vadd.f32 %v723, %v886
      %v888 = vpop.f32.mrf.mxu0
      %v889 = vpop.f32.mrf.mxu0
      %v890 = vadd.f32 %v723, %v889
      %v891 = vpop.f32.mrf.mxu0
      %892 = vdwg.mxu0
      %v893 = vpack.c.bf16 %v641, %v638
      %v894 = vpack.c.bf16 %v649, %v646
      %v895 = vpack.c.bf16 %v657, %v654
      %v896 = vpack.c.bf16 %v665, %v662
      %v897 = vpack.c.bf16 %v673, %v670
      %v898 = vpack.c.bf16 %v681, %v678
      %v899 = vpack.c.bf16 %v689, %v686
      %v900 = vpack.c.bf16 %v697, %v694
      %v901 = vld [vmem:[%s6] sm:$0xf]
      %v902 = vld [vmem:[%s6 + $0x4] sm:$0xf]
      %v903 = vld [vmem:[%s6 + $0x8] sm:$0xf]
      %v904 = vld [vmem:[%s6 + $0xc] sm:$0xf]
      %v905 = vpack.c.bf16 %v834, %v831
      %v906 = vpack.c.bf16 %v842, %v839
      %v907 = vpack.c.bf16 %v850, %v847
      %v908 = vpack.c.bf16 %v858, %v855
      %v909 = vpack.c.bf16 %v866, %v863
      %v910 = vpack.c.bf16 %v874, %v871
      %v911 = vpack.c.bf16 %v882, %v879
      %v912 = vpack.c.bf16 %v890, %v887
      %v913 = vld [vmem:[%s7] sm:$0xf]
      %v914 = vld [vmem:[%s7 + $0x4] sm:$0xf]
      %v915 = vld [vmem:[%s7 + $0x8] sm:$0xf]
      %v916 = vld [vmem:[%s7 + $0xc] sm:$0xf]
      %v921 = vunpack.c.l.b16 %v913
      %v922 = vunpack.c.l.b16 %v914
      %v923 = vunpack.c.l.b16 %v915
      %v924 = vunpack.c.l.b16 %v916
      %v925 = vpack.c.b16 %v922, %v921
      %v926 = vpack.c.b16 %v924, %v923
      %vm929 = vcmask 261120
      %v931 = vsel %vm929, %v905, 0
      %v934 = vsel %vm929, %v906, 0
      %v937 = vsel %vm929, %v907, 0
      %v940 = vsel %vm929, %v908, 0
      %v943 = vsel %vm929, %v909, 0
      %v946 = vsel %vm929, %v910, 0
      %v949 = vsel %vm929, %v911, 0
      %v952 = vsel %vm929, %v912, 0
      %954 = vmatprep.subr.bf16.mxu0 0
      %955 = vmatpush1.bf16.msra.mxu0 0
      %956 = vmatprep.subr.bf16.mxu0 0
      %957 = vmatpush1.bf16.msra.mxu0 0
      %958 = vmatprep.subr.bf16.mxu0 0
      %959 = vmatpush1.bf16.msra.mxu0 0
      %960 = vmatprep.subr.bf16.mxu0 0
      %961 = vmatpush1.bf16.msra.mxu0 0
      %962 = vmatprep.subr.bf16.mxu0 0
      %963 = vmatpush1.bf16.msra.mxu0 0
      %964 = vmatprep.subr.bf16.mxu0 0
      %965 = vmatpush1.bf16.msra.mxu0 0
      %966 = vmatprep.subr.bf16.mxu0 0
      %967 = vmatpush1.bf16.msra.mxu0 %v926
      %968 = vmatprep.subr.bf16.mxu0 0
      %969 = vmatpush1.bf16.msra.mxu0 %v925
      %970 = vmatprep.subr.bf16.mxu0 0
      %971 = vmatpush2.bf16.msra.mxu0 0
      %972 = vmatprep.subr.bf16.mxu0 0
      %973 = vmatpush2.bf16.msra.mxu0 0
      %974 = vmatprep.subr.bf16.mxu0 0
      %975 = vmatpush2.bf16.msra.mxu0 0
      %976 = vmatprep.subr.bf16.mxu0 0
      %977 = vmatpush2.bf16.msra.mxu0 0
      %978 = vmatprep.subr.bf16.mxu0 0
      %979 = vmatpush2.bf16.msra.mxu0 0
      %980 = vmatprep.subr.bf16.mxu0 0
      %981 = vmatpush2.bf16.msra.mxu0 0
      %982 = vmatprep.subr.bf16.mxu0 0
      %983 = vmatpush2.bf16.msra.mxu0 0
      %984 = vmatprep.subr.bf16.mxu0 0
      %985 = vmatpush2.bf16.msra.mxu0 0
      %986 = vmatprep.mubr.bf16.mxu0 0
      %987 = vmatmul.mubr.bf16.gmra.mxu0 %v931
      %v988 = vpop.f32.mrf.mxu0
      %v989 = vadd.f32 0.0, %v988
      %v990 = vpop.f32.mrf.mxu0
      %v991 = vpop.f32.mrf.mxu0
      %v992 = vadd.f32 0.0, %v991
      %v993 = vpop.f32.mrf.mxu0
      %994 = vmatprep.mubr.bf16.mxu0 0
      %995 = vmatmul.mubr.bf16.gmra.mxu0 %v934
      %v996 = vpop.f32.mrf.mxu0
      %v997 = vadd.f32 0.0, %v996
      %v998 = vpop.f32.mrf.mxu0
      %v999 = vpop.f32.mrf.mxu0
      %v1000 = vadd.f32 0.0, %v999
      %v1001 = vpop.f32.mrf.mxu0
      %1002 = vmatprep.mubr.bf16.mxu0 0
      %1003 = vmatmul.mubr.bf16.gmra.mxu0 %v937
      %v1004 = vpop.f32.mrf.mxu0
      %v1005 = vadd.f32 0.0, %v1004
      %v1006 = vpop.f32.mrf.mxu0
      %v1007 = vpop.f32.mrf.mxu0
      %v1008 = vadd.f32 0.0, %v1007
      %v1009 = vpop.f32.mrf.mxu0
      %1010 = vmatprep.mubr.bf16.mxu0 0
      %1011 = vmatmul.mubr.bf16.gmra.mxu0 %v940
      %v1012 = vpop.f32.mrf.mxu0
      %v1013 = vadd.f32 0.0, %v1012
      %v1014 = vpop.f32.mrf.mxu0
      %v1015 = vpop.f32.mrf.mxu0
      %v1016 = vadd.f32 0.0, %v1015
      %v1017 = vpop.f32.mrf.mxu0
      %1018 = vmatprep.mubr.bf16.mxu0 0
      %1019 = vmatmul.mubr.bf16.gmra.mxu0 %v943
      %v1020 = vpop.f32.mrf.mxu0
      %v1021 = vadd.f32 0.0, %v1020
      %v1022 = vpop.f32.mrf.mxu0
      %v1023 = vpop.f32.mrf.mxu0
      %v1024 = vadd.f32 0.0, %v1023
      %v1025 = vpop.f32.mrf.mxu0
      %1026 = vmatprep.mubr.bf16.mxu0 0
      %1027 = vmatmul.mubr.bf16.gmra.mxu0 %v946
      %v1028 = vpop.f32.mrf.mxu0
      %v1029 = vadd.f32 0.0, %v1028
      %v1030 = vpop.f32.mrf.mxu0
      %v1031 = vpop.f32.mrf.mxu0
      %v1032 = vadd.f32 0.0, %v1031
      %v1033 = vpop.f32.mrf.mxu0
      %1034 = vmatprep.mubr.bf16.mxu0 0
      %1035 = vmatmul.mubr.bf16.gmra.mxu0 %v949
      %v1036 = vpop.f32.mrf.mxu0
      %v1037 = vadd.f32 0.0, %v1036
      %v1038 = vpop.f32.mrf.mxu0
      %v1039 = vpop.f32.mrf.mxu0
      %v1040 = vadd.f32 0.0, %v1039
      %v1041 = vpop.f32.mrf.mxu0
      %1042 = vmatprep.mubr.bf16.mxu0 0
      %1043 = vmatmul.mubr.bf16.gmra.mxu0 %v952
      %v1044 = vpop.f32.mrf.mxu0
      %v1045 = vadd.f32 0.0, %v1044
      %v1046 = vpop.f32.mrf.mxu0
      %v1047 = vpop.f32.mrf.mxu0
      %v1048 = vadd.f32 0.0, %v1047
      %v1049 = vpop.f32.mrf.mxu0
      %1050 = vdwg.mxu0
      %v1055 = vunpack.c.l.b16 %v901
      %v1056 = vunpack.c.l.b16 %v902
      %v1057 = vunpack.c.l.b16 %v903
      %v1058 = vunpack.c.l.b16 %v904
      %v1059 = vpack.c.b16 %v1056, %v1055
      %v1060 = vpack.c.b16 %v1058, %v1057
      %v1064 = vsel %vm929, %v893, 0
      %v1067 = vsel %vm929, %v894, 0
      %v1070 = vsel %vm929, %v895, 0
      %v1073 = vsel %vm929, %v896, 0
      %v1076 = vsel %vm929, %v897, 0
      %v1079 = vsel %vm929, %v898, 0
      %v1082 = vsel %vm929, %v899, 0
      %v1085 = vsel %vm929, %v900, 0
      %1087 = vmatprep.subr.bf16.mxu0 0
      %1088 = vmatpush1.bf16.msra.mxu0 0
      %1089 = vmatprep.subr.bf16.mxu0 0
      %1090 = vmatpush1.bf16.msra.mxu0 0
      %1091 = vmatprep.subr.bf16.mxu0 0
      %1092 = vmatpush1.bf16.msra.mxu0 0
      %1093 = vmatprep.subr.bf16.mxu0 0
      %1094 = vmatpush1.bf16.msra.mxu0 0
      %1095 = vmatprep.subr.bf16.mxu0 0
      %1096 = vmatpush1.bf16.msra.mxu0 0
      %1097 = vmatprep.subr.bf16.mxu0 0
      %1098 = vmatpush1.bf16.msra.mxu0 0
      %1099 = vmatprep.subr.bf16.mxu0 0
      %1100 = vmatpush1.bf16.msra.mxu0 %v1060
      %1101 = vmatprep.subr.bf16.mxu0 0
      %1102 = vmatpush1.bf16.msra.mxu0 %v1059
      %1103 = vmatprep.subr.bf16.mxu0 0
      %1104 = vmatpush2.bf16.msra.mxu0 0
      %1105 = vmatprep.subr.bf16.mxu0 0
      %1106 = vmatpush2.bf16.msra.mxu0 0
      %1107 = vmatprep.subr.bf16.mxu0 0
      %1108 = vmatpush2.bf16.msra.mxu0 0
      %1109 = vmatprep.subr.bf16.mxu0 0
      %1110 = vmatpush2.bf16.msra.mxu0 0
      %1111 = vmatprep.subr.bf16.mxu0 0
      %1112 = vmatpush2.bf16.msra.mxu0 0
      %1113 = vmatprep.subr.bf16.mxu0 0
      %1114 = vmatpush2.bf16.msra.mxu0 0
      %1115 = vmatprep.subr.bf16.mxu0 0
      %1116 = vmatpush2.bf16.msra.mxu0 0
      %1117 = vmatprep.subr.bf16.mxu0 0
      %1118 = vmatpush2.bf16.msra.mxu0 0
      %1119 = vmatprep.mubr.bf16.mxu0 0
      %1120 = vmatmul.mubr.bf16.gmra.mxu0 %v1064
      %v1121 = vpop.f32.mrf.mxu0
      %v1122 = vadd.f32 %v989, %v1121
      %v1123 = vpop.f32.mrf.mxu0
      %v1124 = vpop.f32.mrf.mxu0
      %v1125 = vadd.f32 %v992, %v1124
      %v1126 = vpop.f32.mrf.mxu0
      %1127 = vmatprep.mubr.bf16.mxu0 0
      %1128 = vmatmul.mubr.bf16.gmra.mxu0 %v1067
      %v1129 = vpop.f32.mrf.mxu0
      %v1130 = vadd.f32 %v997, %v1129
      %v1131 = vpop.f32.mrf.mxu0
      %v1132 = vpop.f32.mrf.mxu0
      %v1133 = vadd.f32 %v1000, %v1132
      %v1134 = vpop.f32.mrf.mxu0
      %1135 = vmatprep.mubr.bf16.mxu0 0
      %1136 = vmatmul.mubr.bf16.gmra.mxu0 %v1070
      %v1137 = vpop.f32.mrf.mxu0
      %v1138 = vadd.f32 %v1005, %v1137
      %v1139 = vpop.f32.mrf.mxu0
      %v1140 = vpop.f32.mrf.mxu0
      %v1141 = vadd.f32 %v1008, %v1140
      %v1142 = vpop.f32.mrf.mxu0
      %1143 = vmatprep.mubr.bf16.mxu0 0
      %1144 = vmatmul.mubr.bf16.gmra.mxu0 %v1073
      %v1145 = vpop.f32.mrf.mxu0
      %v1146 = vadd.f32 %v1013, %v1145
      %v1147 = vpop.f32.mrf.mxu0
      %v1148 = vpop.f32.mrf.mxu0
      %v1149 = vadd.f32 %v1016, %v1148
      %v1150 = vpop.f32.mrf.mxu0
      %1151 = vmatprep.mubr.bf16.mxu0 0
      %1152 = vmatmul.mubr.bf16.gmra.mxu0 %v1076
      %v1153 = vpop.f32.mrf.mxu0
      %v1154 = vadd.f32 %v1021, %v1153
      %v1155 = vpop.f32.mrf.mxu0
      %v1156 = vpop.f32.mrf.mxu0
      %v1157 = vadd.f32 %v1024, %v1156
      %v1158 = vpop.f32.mrf.mxu0
      %1159 = vmatprep.mubr.bf16.mxu0 0
      %1160 = vmatmul.mubr.bf16.gmra.mxu0 %v1079
      %v1161 = vpop.f32.mrf.mxu0
      %v1162 = vadd.f32 %v1029, %v1161
      %v1163 = vpop.f32.mrf.mxu0
      %v1164 = vpop.f32.mrf.mxu0
      %v1165 = vadd.f32 %v1032, %v1164
      %v1166 = vpop.f32.mrf.mxu0
      %1167 = vmatprep.mubr.bf16.mxu0 0
      %1168 = vmatmul.mubr.bf16.gmra.mxu0 %v1082
      %v1169 = vpop.f32.mrf.mxu0
      %v1170 = vadd.f32 %v1037, %v1169
      %v1171 = vpop.f32.mrf.mxu0
      %v1172 = vpop.f32.mrf.mxu0
      %v1173 = vadd.f32 %v1040, %v1172
      %v1174 = vpop.f32.mrf.mxu0
      %1175 = vmatprep.mubr.bf16.mxu0 0
      %1176 = vmatmul.mubr.bf16.gmra.mxu0 %v1085
      %v1177 = vpop.f32.mrf.mxu0
      %v1178 = vadd.f32 %v1045, %v1177
      %v1179 = vpop.f32.mrf.mxu0
      %v1180 = vpop.f32.mrf.mxu0
      %v1181 = vadd.f32 %v1048, %v1180
      %v1182 = vpop.f32.mrf.mxu0
      %1183 = vdwg.mxu0
      %v1184 = vld [vmem:[%s8] sm:$0x1]
      %v1186 = vlaneseq
      %v1187 = vshrl.u32 %v1186, 7
      %v1188 = vsub.s32 0, %v1187
      %v1189 = vrot.slane %v1184, %v1188
      %v1191 = vadd.f32 %v1122, %v1189
      %v1192 = vadd.f32 %v1125, %v1189
      %v1193 = vadd.f32 %v1130, %v1189
      %v1194 = vadd.f32 %v1133, %v1189
      %v1195 = vadd.f32 %v1138, %v1189
      %v1196 = vadd.f32 %v1141, %v1189
      %v1197 = vadd.f32 %v1146, %v1189
      %v1198 = vadd.f32 %v1149, %v1189
      %v1199 = vadd.f32 %v1154, %v1189
      %v1200 = vadd.f32 %v1157, %v1189
      %v1201 = vadd.f32 %v1162, %v1189
      %v1202 = vadd.f32 %v1165, %v1189
      %v1203 = vadd.f32 %v1170, %v1189
      %v1204 = vadd.f32 %v1173, %v1189
      %v1205 = vadd.f32 %v1178, %v1189
      %v1206 = vadd.f32 %v1181, %v1189
      %1207 = vst.msk [vmem:[%s487] sm:$0xff] %vm929, %v638
      %1208 = vst.msk [vmem:[%s487 + $0x8] sm:$0xff] %vm929, %v641
      %1209 = vst.msk [vmem:[%s487 + $0x10] sm:$0xff] %vm929, %v646
      %1210 = vst.msk [vmem:[%s487 + $0x18] sm:$0xff] %vm929, %v649
      %1211 = vst.msk [vmem:[%s487 + $0x20] sm:$0xff] %vm929, %v654
      %1212 = vst.msk [vmem:[%s487 + $0x28] sm:$0xff] %vm929, %v657
      %1213 = vst.msk [vmem:[%s487 + $0x30] sm:$0xff] %vm929, %v662
      %1214 = vst.msk [vmem:[%s487 + $0x38] sm:$0xff] %vm929, %v665
      %1215 = vst.msk [vmem:[%s487 + $0x40] sm:$0xff] %vm929, %v670
      %1216 = vst.msk [vmem:[%s487 + $0x48] sm:$0xff] %vm929, %v673
      %1217 = vst.msk [vmem:[%s487 + $0x50] sm:$0xff] %vm929, %v678
      %1218 = vst.msk [vmem:[%s487 + $0x58] sm:$0xff] %vm929, %v681
      %1219 = vst.msk [vmem:[%s487 + $0x60] sm:$0xff] %vm929, %v686
      %1220 = vst.msk [vmem:[%s487 + $0x68] sm:$0xff] %vm929, %v689
      %1221 = vst.msk [vmem:[%s487 + $0x70] sm:$0xff] %vm929, %v694
      %1222 = vst.msk [vmem:[%s487 + $0x78] sm:$0xff] %vm929, %v697
      %1223 = vst.msk [vmem:[%s497] sm:$0xff] %vm929, %v831
      %1224 = vst.msk [vmem:[%s497 + $0x8] sm:$0xff] %vm929, %v834
      %1225 = vst.msk [vmem:[%s497 + $0x10] sm:$0xff] %vm929, %v839
      %1226 = vst.msk [vmem:[%s497 + $0x18] sm:$0xff] %vm929, %v842
      %1227 = vst.msk [vmem:[%s497 + $0x20] sm:$0xff] %vm929, %v847
      %1228 = vst.msk [vmem:[%s497 + $0x28] sm:$0xff] %vm929, %v850
      %1229 = vst.msk [vmem:[%s497 + $0x30] sm:$0xff] %vm929, %v855
      %1230 = vst.msk [vmem:[%s497 + $0x38] sm:$0xff] %vm929, %v858
      %1231 = vst.msk [vmem:[%s497 + $0x40] sm:$0xff] %vm929, %v863
      %1232 = vst.msk [vmem:[%s497 + $0x48] sm:$0xff] %vm929, %v866
      %1233 = vst.msk [vmem:[%s497 + $0x50] sm:$0xff] %vm929, %v871
      %1234 = vst.msk [vmem:[%s497 + $0x58] sm:$0xff] %vm929, %v874
      %1235 = vst.msk [vmem:[%s497 + $0x60] sm:$0xff] %vm929, %v879
      %1236 = vst.msk [vmem:[%s497 + $0x68] sm:$0xff] %vm929, %v882
      %1237 = vst.msk [vmem:[%s497 + $0x70] sm:$0xff] %vm929, %v887
      %1238 = vst.msk [vmem:[%s497 + $0x78] sm:$0xff] %vm929, %v890
      %1239 = vst.msk [vmem:[%s507] sm:$0xff] %vm929, %v1191
      %1240 = vst.msk [vmem:[%s507 + $0x8] sm:$0xff] %vm929, %v1192
      %1241 = vst.msk [vmem:[%s507 + $0x10] sm:$0xff] %vm929, %v1193
      %1242 = vst.msk [vmem:[%s507 + $0x18] sm:$0xff] %vm929, %v1194
      %1243 = vst.msk [vmem:[%s507 + $0x20] sm:$0xff] %vm929, %v1195
      %1244 = vst.msk [vmem:[%s507 + $0x28] sm:$0xff] %vm929, %v1196
      %1245 = vst.msk [vmem:[%s507 + $0x30] sm:$0xff] %vm929, %v1197
      %1246 = vst.msk [vmem:[%s507 + $0x38] sm:$0xff] %vm929, %v1198
      %1247 = vst.msk [vmem:[%s507 + $0x40] sm:$0xff] %vm929, %v1199
      %1248 = vst.msk [vmem:[%s507 + $0x48] sm:$0xff] %vm929, %v1200
      %1249 = vst.msk [vmem:[%s507 + $0x50] sm:$0xff] %vm929, %v1201
      %1250 = vst.msk [vmem:[%s507 + $0x58] sm:$0xff] %vm929, %v1202
      %1251 = vst.msk [vmem:[%s507 + $0x60] sm:$0xff] %vm929, %v1203
      %1252 = vst.msk [vmem:[%s507 + $0x68] sm:$0xff] %vm929, %v1204
      %1253 = vst.msk [vmem:[%s507 + $0x70] sm:$0xff] %vm929, %v1205
      %1254 = vst.msk [vmem:[%s507 + $0x78] sm:$0xff] %vm929, %v1206
      %s1255 = smul.u32 16, %s28
      %p1256 = scmp.lt.s32.totalorder %s27, 1
      %s1257 = scalar_select %p1256, %s27, 1
      %p1258 = scmp.lt.s32.totalorder %s1255, 31
      %s1259 = scalar_select %p1258, %s1255, 31
      %s1260 = smul.addr %s1257, 32
      %s1261 = sadd.s32 %s1259, %s1260
      %s1262 = smul.addr %s1261, 8
      %s1263 = scalar_lea.vmem %s9, %s1262
      %s1264 = smul.u32 16, %s28
      %p1265 = scmp.lt.s32.totalorder %s27, 1
      %s1266 = scalar_select %p1265, %s27, 1
      %p1267 = scmp.lt.s32.totalorder %s1264, 31
      %s1268 = scalar_select %p1267, %s1264, 31
      %s1269 = smul.addr %s1266, 32
      %s1270 = sadd.s32 %s1268, %s1269
      %s1271 = smul.addr %s1270, 8
      %s1272 = scalar_lea.vmem %s10, %s1271
      %s1273 = smul.u32 16, %s28
      %p1274 = scmp.lt.s32.totalorder %s27, 1
      %s1275 = scalar_select %p1274, %s27, 1
      %p1276 = scmp.lt.s32.totalorder %s1273, 31
      %s1277 = scalar_select %p1276, %s1273, 31
      %s1278 = smul.addr %s1275, 32
      %s1279 = sadd.s32 %s1277, %s1278
      %s1280 = smul.addr %s1279, 8
      %s1281 = scalar_lea.vmem %s11, %s1280
      // Predicated region
      $region57: #{tpu_custom_call.1} parent=55 // pred_check
        %p1282 = pneg %p258
      $region58: #{tpu_custom_call.1} parent=55 // pred_check_branch
        %1284 = sbr.rel (%p1282) target = $region60
      $region59: #{tpu_custom_call.1} parent=55 // pred_region
        %s1285 = smul.u32 16, %s28
      $region60: #{tpu_custom_call.1} parent=55 // pred_fallthru
        _
      // Predicated region
      $region61: #{tpu_custom_call.1} parent=55 // pred_check
        %p1286 = pneg %p286
      $region62: #{tpu_custom_call.1} parent=55 // pred_check_branch
        %1288 = sbr.rel (%p1286) target = $region64
      $region63: #{tpu_custom_call.1} parent=55 // pred_region
        %s1289 = smul.u32 16, %s28
      $region64: #{tpu_custom_call.1} parent=55 // pred_fallthru
        _
      // Predicated region
      $region65: #{tpu_custom_call.1} parent=55 // pred_check
        %p1290 = pneg %p314
      $region66: #{tpu_custom_call.1} parent=55 // pred_check_branch
        %1292 = sbr.rel (%p1290) target = $region68
      $region67: #{tpu_custom_call.1} parent=55 // pred_region
        %s1293 = smul.u32 16, %s28
      $region68: #{tpu_custom_call.1} parent=55 // pred_fallthru
        _
    $region56: #{tpu_custom_call.1} parent=5 // pred_fallthru
      _
    %p1294 = scmp.le.s32.totalorder 2, %s18
    // Predicated region
    $region69: #{tpu_custom_call.1} parent=5 // pred_check
      %p1295 = pneg %p1294
    $region70: #{tpu_custom_call.1} parent=5 // pred_check_branch
      %1297 = sbr.rel (%p1295) target = $region72
    $region71: #{tpu_custom_call.1} parent=5 // pred_region
      %s1298 = ssub.s32 %s18, 2
      // Predicated region
      $region73: #{tpu_custom_call.1} parent=71 // pred_check
        %p1299 = pneg %p264
      $region74: #{tpu_custom_call.1} parent=71 // pred_check_branch
        %1301 = sbr.rel (%p1299) target = $region76
      $region75: #{tpu_custom_call.1} parent=71 // pred_region
        %s1302 = smul.u32 16, %s30
        %p1303 = scmp.lt.s32.totalorder %s29, 1
        %s1304 = scalar_select %p1303, %s29, 1
        %p1305 = scmp.lt.s32.totalorder %s1302, 31
        %s1306 = scalar_select %p1305, %s1302, 31
        %s1307 = smul.addr %s1304, 32
        %s1308 = sadd.s32 %s1306, %s1307
        %s1309 = smul.addr %s1308, 8
        %s1310 = scalar_lea.vmem %s9, %s1309
      $region76: #{tpu_custom_call.1} parent=71 // pred_fallthru
        _
      // Predicated region
      $region77: #{tpu_custom_call.1} parent=71 // pred_check
        %p1311 = pneg %p292
      $region78: #{tpu_custom_call.1} parent=71 // pred_check_branch
        %1313 = sbr.rel (%p1311) target = $region80
      $region79: #{tpu_custom_call.1} parent=71 // pred_region
        %s1314 = smul.u32 16, %s30
        %p1315 = scmp.lt.s32.totalorder %s29, 1
        %s1316 = scalar_select %p1315, %s29, 1
        %p1317 = scmp.lt.s32.totalorder %s1314, 31
        %s1318 = scalar_select %p1317, %s1314, 31
        %s1319 = smul.addr %s1316, 32
        %s1320 = sadd.s32 %s1318, %s1319
        %s1321 = smul.addr %s1320, 8
        %s1322 = scalar_lea.vmem %s10, %s1321
      $region80: #{tpu_custom_call.1} parent=71 // pred_fallthru
        _
      // Predicated region
      $region81: #{tpu_custom_call.1} parent=71 // pred_check
        %p1323 = pneg %p320
      $region82: #{tpu_custom_call.1} parent=71 // pred_check_branch
        %1325 = sbr.rel (%p1323) target = $region84
      $region83: #{tpu_custom_call.1} parent=71 // pred_region
        %s1326 = smul.u32 16, %s30
        %p1327 = scmp.lt.s32.totalorder %s29, 1
        %s1328 = scalar_select %p1327, %s29, 1
        %p1329 = scmp.lt.s32.totalorder %s1326, 31
        %s1330 = scalar_select %p1329, %s1326, 31
        %s1331 = smul.addr %s1328, 32
        %s1332 = sadd.s32 %s1330, %s1331
        %s1333 = smul.addr %s1332, 8
        %s1334 = scalar_lea.vmem %s11, %s1333
      $region84: #{tpu_custom_call.1} parent=71 // pred_fallthru
        _
    $region72: #{tpu_custom_call.1} parent=5 // pred_fallthru
      _
  $region6: #{tpu_custom_call.1} parent=0 // loop_footer
    %s22 = sadd.s32 1, %s18
  $region7: #{tpu_custom_call.1} parent=0 // loop_footer_branch
    %17 = sbr.rel target = $region3
  $region8: #{tpu_custom_call.1} parent=0 // loop_exit
    _

</llo_original>
